<compile_context>
chip_gen: v6e
topology: v6e:2x2x1
jax: 0.10.0
libtpu: 0.0.40
codegen_flags: <defaults>
</compile_context>

<pallas_src>
import jax
import jax.numpy as jnp
import numpy as np
from jax import lax
from jax.experimental import pallas as pl
from jax.experimental.pallas import tpu as pltpu

EPS = 1e-5  # torch.nn.BatchNorm2d default


def _make_kernel(N, H, W):
    S = N * H * W
    inv_S = 1.0 / S

    def _bn(a, gamma, beta, ones_col):
        # a: (C, S).  Training-mode BN, biased variance, single pass.
        # Lane reductions offloaded to the MXU (ones-matmul); XLU stays free
        # for the depthwise rolls.
        s1 = jnp.dot(a, ones_col, preferred_element_type=jnp.float32)       # (C, 1)
        s2 = jnp.dot(a * a, ones_col, preferred_element_type=jnp.float32)   # (C, 1)
        mean = s1 * inv_S
        var = s2 * inv_S - mean * mean
        scale = gamma * lax.rsqrt(var + EPS)
        return a * scale + (beta - mean * scale)

    def kernel(x_ref, w1_ref, g1_ref, be1_ref,
               wdw_ref, g2_ref, be2_ref,
               w2_ref, g3_ref, be3_ref, masks_ref, out_ref):
        x = x_ref[...]                                   # (C, S), lane-dense f32
        ones_col = jnp.ones((S, 1), jnp.float32)

        # --- grouped 1x1 conv #1 (block-diag dense, shuffle folded in) ---
        # Conv bias omitted: cancels under the following train-mode BN.
        y = jnp.dot(w1_ref[...], x, preferred_element_type=jnp.float32)
        # --- BN1 + ReLU ---
        y = jnp.maximum(_bn(y, g1_ref[...], be1_ref[...], ones_col), 0.0)

        # --- depthwise 3x3 conv, stride 1, padding 1 ---
        # Spatial flattened on the lane axis: s = n*H*W + h*W + w.
        # 2 vertical rolls (h-masked once), 6 horizontal rolls (w-masked);
        # 8 XLU rotations total, masks precomputed host-side.
        masks = masks_ref[...]                           # (4, S) f32 {0,1}
        hm = masks[0:1, :]        # valid when reading row h-1
        hp = masks[1:2, :]        # valid when reading row h+1
        wm = masks[2:3, :]        # valid when reading col w-1
        wp = masks[3:4, :]        # valid when reading col w+1
        wdw = wdw_ref[...]        # (C, 9), row-major 3x3 taps

        y_up = pltpu.roll(y, W, axis=1) * hm             # out[s] = y[s - W]
        y_dn = pltpu.roll(y, S - W, axis=1) * hp         # out[s] = y[s + W]

        z = y * wdw[:, 4:5]                                            # center
        z = z + (pltpu.roll(y_up, 1, axis=1) * wm) * wdw[:, 0:1]       # (-1,-1)
        z = z + y_up * wdw[:, 1:2]                                     # (-1, 0)
        z = z + (pltpu.roll(y_up, S - 1, axis=1) * wp) * wdw[:, 2:3]   # (-1,+1)
        z = z + (pltpu.roll(y, 1, axis=1) * wm) * wdw[:, 3:4]          # ( 0,-1)
        z = z + (pltpu.roll(y, S - 1, axis=1) * wp) * wdw[:, 5:6]      # ( 0,+1)
        z = z + (pltpu.roll(y_dn, 1, axis=1) * wm) * wdw[:, 6:7]       # (+1,-1)
        z = z + y_dn * wdw[:, 7:8]                                     # (+1, 0)
        z = z + (pltpu.roll(y_dn, S - 1, axis=1) * wp) * wdw[:, 8:9]   # (+1,+1)

        # --- BN2 --- (depthwise bias cancels, omitted)
        z = _bn(z, g2_ref[...], be2_ref[...], ones_col)
        # --- grouped 1x1 conv #2 (block-diag dense); bias cancels under BN3 ---
        z = jnp.dot(w2_ref[...], z, preferred_element_type=jnp.float32)
        # --- BN3 ---
        z = _bn(z, g3_ref[...], be3_ref[...], ones_col)
        # --- residual add + ReLU, single lane-dense unmasked store ---
        out_ref[...] = jnp.maximum(z + x, 0.0)

    return kernel


# ---------------- plain-JAX glue: parameter packing ----------------

def grouped_pointwise_dense(w, groups):
    """w: (C_out, C_in//G) grouped 1x1 weight -> dense (C_out, C_in) block-diag
    so that y = W_dense @ x for activations laid out as (C_in, S)."""
    c_out, cpg_in = np.asarray(w).shape
    cpg_out = c_out // groups
    dense = np.zeros((c_out, groups * cpg_in), np.float32)
    wn = np.asarray(w)
    for o in range(c_out):
        g = o // cpg_out
        dense[o, g * cpg_in:(g + 1) * cpg_in] = wn[o]
    return dense


def shuffle_sigma(c, groups):
    """sigma[c_new] = pre-shuffle channel feeding post-shuffle channel c_new."""
    cpg = c // groups
    return np.array([(cn % groups) * cpg + (cn // groups) for cn in range(c)],
                    np.int32)


def pack_params(raw, C, G):
    sigma = shuffle_sigma(C, G)
    w1_dense = grouped_pointwise_dense(np.asarray(raw["w1"])[:, :, 0, 0], G)
    w2_dense = grouped_pointwise_dense(np.asarray(raw["w2"])[:, :, 0, 0], G)
    col = lambda v, idx=None: jnp.asarray(
        (np.asarray(v) if idx is None else np.asarray(v)[idx]).reshape(C, 1))
    # Conv biases b1/bdw/b2 are dropped: they cancel exactly under the
    # training-mode BatchNorms that follow each conv.
    return {
        # shuffle folded into conv1: permute output rows of w1 and g1/be1
        "w1": jnp.asarray(w1_dense[sigma, :]),                           # (C, C)
        "g1": col(raw["g1"], sigma),
        "be1": col(raw["be1"], sigma),
        "wdw": jnp.asarray(np.asarray(raw["wdw"])[:, 0].reshape(C, 9)),  # (C, 9)
        "g2": col(raw["g2"]),
        "be2": col(raw["be2"]),
        "w2": jnp.asarray(w2_dense),                                     # (C, C)
        "g3": col(raw["g3"]),
        "be3": col(raw["be3"]),
    }


def _boundary_masks(N, H, W):
    """(4, S) f32 validity masks for the depthwise taps, precomputed host-side."""
    S = N * H * W
    lane = np.arange(S)
    hh = (lane // W) % H
    ww = lane % W
    m = np.stack([hh >= 1, hh < H - 1, ww >= 1, ww < W - 1]).astype(np.float32)
    return jnp.asarray(m)


def shufflenet_block_cmajor(x_cs, kparams, N, H, W):
    """Channel-major entry point: x_cs is (C, N*H*W).  Stacked blocks chain in
    this layout with no NCHW transposes in between."""
    C, S = x_cs.shape
    masks = _boundary_masks(N, H, W)
    args = (x_cs.astype(jnp.float32),
            kparams["w1"], kparams["g1"], kparams["be1"],
            kparams["wdw"], kparams["g2"], kparams["be2"],
            kparams["w2"], kparams["g3"], kparams["be3"], masks)

    flops = int(2 * 2 * C * C * S          # two grouped 1x1 convs as dense matmuls
                + 3 * 2 * 2 * C * S        # BN sum / sum-of-squares matmuls
                + 9 * 2 * C * S            # depthwise taps
                + 20 * C * S)              # masks, BN affine, residual, ReLUs
    bytes_accessed = int(4 * (2 * C * S + 2 * C * C + 9 * C + 6 * C + 4 * S))

    return pl.pallas_call(
        _make_kernel(N, H, W),
        out_shape=jax.ShapeDtypeStruct((C, S), jnp.float32),
        in_specs=[pl.BlockSpec(memory_space=pltpu.MemorySpace.VMEM)
                  for _ in args],
        out_specs=pl.BlockSpec(memory_space=pltpu.MemorySpace.VMEM),
        cost_estimate=pl.CostEstimate(flops=flops,
                                      transcendentals=3 * C,
                                      bytes_accessed=bytes_accessed),
    )(*args)


def shufflenet_block(x_nchw, kparams):
    """NCHW wrapper (only used at the edges / for the test harness)."""
    N, C, H, W = x_nchw.shape
    x_cs = jnp.transpose(x_nchw, (1, 0, 2, 3)).reshape(C, N * H * W)
    out_cs = shufflenet_block_cmajor(x_cs, kparams, N, H, W)
    return jnp.transpose(out_cs.reshape(C, N, H, W), (1, 0, 2, 3))


# ---------------- pure-JAX reference (mirrors the PyTorch module) ----------------

def reference(x, p, groups):
    dn = ("NCHW", "OIHW", "NCHW")

    def bn(a, g, b):
        mean = jnp.mean(a, axis=(0, 2, 3), keepdims=True)
        var = jnp.mean((a - mean) ** 2, axis=(0, 2, 3), keepdims=True)
        return ((a - mean) * lax.rsqrt(var + EPS) * g.reshape(1, -1, 1, 1)
                + b.reshape(1, -1, 1, 1))

    N, C, H, W = x.shape
    y = lax.conv_general_dilated(x, p["w1"], (1, 1), "VALID",
                                 dimension_numbers=dn,
                                 feature_group_count=groups)
    y = y + p["b1"].reshape(1, -1, 1, 1)
    y = jnp.maximum(bn(y, p["g1"], p["be1"]), 0.0)
    # channel shuffle
    y = y.reshape(N, groups, C // groups, H, W).transpose(0, 2, 1, 3, 4).reshape(N, C, H, W)
    z = lax.conv_general_dilated(y, p["wdw"], (1, 1), ((1, 1), (1, 1)),
                                 dimension_numbers=dn,
                                 feature_group_count=C)
    z = z + p["bdw"].reshape(1, -1, 1, 1)
    z = bn(z, p["g2"], p["be2"])
    z = lax.conv_general_dilated(z, p["w2"], (1, 1), "VALID",
                                 dimension_numbers=dn,
                                 feature_group_count=groups)
    z = z + p["b2"].reshape(1, -1, 1, 1)
    z = bn(z, p["g3"], p["be3"])
    return jnp.maximum(z + x, 0.0)


if __name__ == "__main__":
    # Shapes consistent with the module: in_features=16, num_groups=4.
    N, C, H, W = 2, 16, 16, 16
    G = 4
    CPG = C // G

    key = jax.random.PRNGKey(0)
    keys = jax.random.split(key, 16)
    x = jax.random.normal(keys[0], (N, C, H, W), jnp.float32)

    # PyTorch-shaped parameters (deterministic synthetic init).
    raw = {
        "w1":  0.2 * jax.random.normal(keys[1], (C, CPG, 1, 1), jnp.float32),
        "b1":  0.1 * jax.random.normal(keys[2], (C,), jnp.float32),
        "wdw": 0.2 * jax.random.normal(keys[3], (C, 1, 3, 3), jnp.float32),
        "bdw": 0.1 * jax.random.normal(keys[4], (C,), jnp.float32),
        "w2":  0.2 * jax.random.normal(keys[5], (C, CPG, 1, 1), jnp.float32),
        "b2":  0.1 * jax.random.normal(keys[6], (C,), jnp.float32),
        "g1":  1.0 + 0.1 * jax.random.normal(keys[7], (C,), jnp.float32),
        "be1": 0.1 * jax.random.normal(keys[8], (C,), jnp.float32),
        "g2":  1.0 + 0.1 * jax.random.normal(keys[9], (C,), jnp.float32),
        "be2": 0.1 * jax.random.normal(keys[10], (C,), jnp.float32),
        "g3":  1.0 + 0.1 * jax.random.normal(keys[11], (C,), jnp.float32),
        "be3": 0.1 * jax.random.normal(keys[12], (C,), jnp.float32),
    }

    kparams = pack_params(raw, C, G)

    out = jax.block_until_ready(shufflenet_block(x, kparams))
    ref = jax.block_until_ready(reference(x, raw, G))

    np.testing.assert_allclose(np.asarray(out), np.asarray(ref),
                               rtol=1e-2, atol=1e-2)
    print("KERNEL_OK")
</pallas_src>

<mosaic_0001>
module attributes {stable_mosaic.version = 11 : i64} {
  func.func @kernel(%arg0: memref<16x512xf32, #tpu.memory_space<vmem>>, %arg1: memref<16x16xf32, #tpu.memory_space<vmem>>, %arg2: memref<16x1xf32, #tpu.memory_space<vmem>>, %arg3: memref<16x1xf32, #tpu.memory_space<vmem>>, %arg4: memref<16x9xf32, #tpu.memory_space<vmem>>, %arg5: memref<16x1xf32, #tpu.memory_space<vmem>>, %arg6: memref<16x1xf32, #tpu.memory_space<vmem>>, %arg7: memref<16x16xf32, #tpu.memory_space<vmem>>, %arg8: memref<16x1xf32, #tpu.memory_space<vmem>>, %arg9: memref<16x1xf32, #tpu.memory_space<vmem>>, %arg10: memref<4x512xf32, #tpu.memory_space<vmem>>, %arg11: memref<16x512xf32, #tpu.memory_space<vmem>>) attributes {dimension_semantics = [], scalar_prefetch = 0 : i64, scratch_operands = 0 : i64, tpu.core_type = #tpu.core_type<tc>} {
    %c0 = arith.constant 0 : index
    %c0_0 = arith.constant 0 : index
    %0 = vector.load %arg0[%c0, %c0_0] : memref<16x512xf32, #tpu.memory_space<vmem>>, vector<16x512xf32>
    %cst = arith.constant 1.000000e+00 : f32
    %1 = vector.broadcast %cst : f32 to vector<512x1xf32>
    %c0_1 = arith.constant 0 : index
    %c0_2 = arith.constant 0 : index
    %2 = vector.load %arg1[%c0_1, %c0_2] : memref<16x16xf32, #tpu.memory_space<vmem>>, vector<16x16xf32>
    %cst_3 = arith.constant dense<0.000000e+00> : vector<16x512xf32>
    %3 = tpu.matmul %2, %0, %cst_3 {dimension_numbers = #tpu.dot_dimension_numbers<[1], [0], [0], [1], [0, 0, 1, 1], [], []>} : vector<16x16xf32>, vector<16x512xf32>, vector<16x512xf32> -> vector<16x512xf32>
    %c0_4 = arith.constant 0 : index
    %c0_5 = arith.constant 0 : index
    %4 = vector.load %arg2[%c0_4, %c0_5] : memref<16x1xf32, #tpu.memory_space<vmem>>, vector<16x1xf32>
    %c0_6 = arith.constant 0 : index
    %c0_7 = arith.constant 0 : index
    %5 = vector.load %arg3[%c0_6, %c0_7] : memref<16x1xf32, #tpu.memory_space<vmem>>, vector<16x1xf32>
    %cst_8 = arith.constant dense<0.000000e+00> : vector<16x1xf32>
    %6 = tpu.matmul %3, %1, %cst_8 {dimension_numbers = #tpu.dot_dimension_numbers<[1], [0], [0], [1], [0, 0, 1, 1], [], []>} : vector<16x512xf32>, vector<512x1xf32>, vector<16x1xf32> -> vector<16x1xf32>
    %7 = arith.mulf %3, %3 : vector<16x512xf32>
    %cst_9 = arith.constant dense<0.000000e+00> : vector<16x1xf32>
    %8 = tpu.matmul %7, %1, %cst_9 {dimension_numbers = #tpu.dot_dimension_numbers<[1], [0], [0], [1], [0, 0, 1, 1], [], []>} : vector<16x512xf32>, vector<512x1xf32>, vector<16x1xf32> -> vector<16x1xf32>
    %cst_10 = arith.constant 0.001953125 : f32
    %9 = vector.broadcast %cst_10 : f32 to vector<16x1xf32>
    %10 = arith.mulf %6, %9 : vector<16x1xf32>
    %cst_11 = arith.constant 0.001953125 : f32
    %11 = vector.broadcast %cst_11 : f32 to vector<16x1xf32>
    %12 = arith.mulf %8, %11 : vector<16x1xf32>
    %13 = arith.mulf %10, %10 : vector<16x1xf32>
    %14 = arith.subf %12, %13 : vector<16x1xf32>
    %cst_12 = arith.constant 9.99999974E-6 : f32
    %15 = vector.broadcast %cst_12 : f32 to vector<16x1xf32>
    %16 = arith.addf %14, %15 : vector<16x1xf32>
    %17 = math.rsqrt %16 : vector<16x1xf32>
    %18 = arith.mulf %4, %17 : vector<16x1xf32>
    %19 = vector.broadcast %18 : vector<16x1xf32> to vector<16x512xf32>
    %20 = arith.mulf %3, %19 : vector<16x512xf32>
    %21 = arith.mulf %10, %18 : vector<16x1xf32>
    %22 = arith.subf %5, %21 : vector<16x1xf32>
    %23 = vector.broadcast %22 : vector<16x1xf32> to vector<16x512xf32>
    %24 = arith.addf %20, %23 : vector<16x512xf32>
    %cst_13 = arith.constant 0.000000e+00 : f32
    %25 = vector.broadcast %cst_13 : f32 to vector<16x512xf32>
    %26 = arith.maximumf %24, %25 : vector<16x512xf32>
    %c0_14 = arith.constant 0 : index
    %c0_15 = arith.constant 0 : index
    %27 = vector.load %arg10[%c0_14, %c0_15] : memref<4x512xf32, #tpu.memory_space<vmem>>, vector<4x512xf32>
    %28 = vector.extract_strided_slice %27 {offsets = [0, 0], sizes = [1, 512], strides = [1, 1]} : vector<4x512xf32> to vector<1x512xf32>
    %29 = vector.extract_strided_slice %27 {offsets = [1, 0], sizes = [1, 512], strides = [1, 1]} : vector<4x512xf32> to vector<1x512xf32>
    %30 = vector.extract_strided_slice %27 {offsets = [2, 0], sizes = [1, 512], strides = [1, 1]} : vector<4x512xf32> to vector<1x512xf32>
    %31 = vector.extract_strided_slice %27 {offsets = [3, 0], sizes = [1, 512], strides = [1, 1]} : vector<4x512xf32> to vector<1x512xf32>
    %c0_16 = arith.constant 0 : index
    %c0_17 = arith.constant 0 : index
    %32 = vector.load %arg4[%c0_16, %c0_17] : memref<16x9xf32, #tpu.memory_space<vmem>>, vector<16x9xf32>
    %c16_i32 = arith.constant 16 : i32
    %33 = tpu.dynamic_rotate %26 by %c16_i32 dim 1 : vector<16x512xf32>, i32 -> vector<16x512xf32>
    %34 = vector.broadcast %28 : vector<1x512xf32> to vector<16x512xf32>
    %35 = arith.mulf %33, %34 : vector<16x512xf32>
    %c496_i32 = arith.constant 496 : i32
    %36 = tpu.dynamic_rotate %26 by %c496_i32 dim 1 : vector<16x512xf32>, i32 -> vector<16x512xf32>
    %37 = vector.broadcast %29 : vector<1x512xf32> to vector<16x512xf32>
    %38 = arith.mulf %36, %37 : vector<16x512xf32>
    %39 = vector.extract_strided_slice %32 {offsets = [0, 4], sizes = [16, 1], strides = [1, 1]} : vector<16x9xf32> to vector<16x1xf32>
    %40 = vector.broadcast %39 : vector<16x1xf32> to vector<16x512xf32>
    %41 = arith.mulf %26, %40 : vector<16x512xf32>
    %c1_i32 = arith.constant 1 : i32
    %42 = tpu.dynamic_rotate %35 by %c1_i32 dim 1 : vector<16x512xf32>, i32 -> vector<16x512xf32>
    %43 = vector.broadcast %30 : vector<1x512xf32> to vector<16x512xf32>
    %44 = arith.mulf %42, %43 : vector<16x512xf32>
    %45 = vector.extract_strided_slice %32 {offsets = [0, 0], sizes = [16, 1], strides = [1, 1]} : vector<16x9xf32> to vector<16x1xf32>
    %46 = vector.broadcast %45 : vector<16x1xf32> to vector<16x512xf32>
    %47 = arith.mulf %44, %46 : vector<16x512xf32>
    %48 = arith.addf %41, %47 : vector<16x512xf32>
    %49 = vector.extract_strided_slice %32 {offsets = [0, 1], sizes = [16, 1], strides = [1, 1]} : vector<16x9xf32> to vector<16x1xf32>
    %50 = vector.broadcast %49 : vector<16x1xf32> to vector<16x512xf32>
    %51 = arith.mulf %35, %50 : vector<16x512xf32>
    %52 = arith.addf %48, %51 : vector<16x512xf32>
    %c511_i32 = arith.constant 511 : i32
    %53 = tpu.dynamic_rotate %35 by %c511_i32 dim 1 : vector<16x512xf32>, i32 -> vector<16x512xf32>
    %54 = vector.broadcast %31 : vector<1x512xf32> to vector<16x512xf32>
    %55 = arith.mulf %53, %54 : vector<16x512xf32>
    %56 = vector.extract_strided_slice %32 {offsets = [0, 2], sizes = [16, 1], strides = [1, 1]} : vector<16x9xf32> to vector<16x1xf32>
    %57 = vector.broadcast %56 : vector<16x1xf32> to vector<16x512xf32>
    %58 = arith.mulf %55, %57 : vector<16x512xf32>
    %59 = arith.addf %52, %58 : vector<16x512xf32>
    %c1_i32_18 = arith.constant 1 : i32
    %60 = tpu.dynamic_rotate %26 by %c1_i32_18 dim 1 : vector<16x512xf32>, i32 -> vector<16x512xf32>
    %61 = vector.broadcast %30 : vector<1x512xf32> to vector<16x512xf32>
    %62 = arith.mulf %60, %61 : vector<16x512xf32>
    %63 = vector.extract_strided_slice %32 {offsets = [0, 3], sizes = [16, 1], strides = [1, 1]} : vector<16x9xf32> to vector<16x1xf32>
    %64 = vector.broadcast %63 : vector<16x1xf32> to vector<16x512xf32>
    %65 = arith.mulf %62, %64 : vector<16x512xf32>
    %66 = arith.addf %59, %65 : vector<16x512xf32>
    %c511_i32_19 = arith.constant 511 : i32
    %67 = tpu.dynamic_rotate %26 by %c511_i32_19 dim 1 : vector<16x512xf32>, i32 -> vector<16x512xf32>
    %68 = vector.broadcast %31 : vector<1x512xf32> to vector<16x512xf32>
    %69 = arith.mulf %67, %68 : vector<16x512xf32>
    %70 = vector.extract_strided_slice %32 {offsets = [0, 5], sizes = [16, 1], strides = [1, 1]} : vector<16x9xf32> to vector<16x1xf32>
    %71 = vector.broadcast %70 : vector<16x1xf32> to vector<16x512xf32>
    %72 = arith.mulf %69, %71 : vector<16x512xf32>
    %73 = arith.addf %66, %72 : vector<16x512xf32>
    %c1_i32_20 = arith.constant 1 : i32
    %74 = tpu.dynamic_rotate %38 by %c1_i32_20 dim 1 : vector<16x512xf32>, i32 -> vector<16x512xf32>
    %75 = vector.broadcast %30 : vector<1x512xf32> to vector<16x512xf32>
    %76 = arith.mulf %74, %75 : vector<16x512xf32>
    %77 = vector.extract_strided_slice %32 {offsets = [0, 6], sizes = [16, 1], strides = [1, 1]} : vector<16x9xf32> to vector<16x1xf32>
    %78 = vector.broadcast %77 : vector<16x1xf32> to vector<16x512xf32>
    %79 = arith.mulf %76, %78 : vector<16x512xf32>
    %80 = arith.addf %73, %79 : vector<16x512xf32>
    %81 = vector.extract_strided_slice %32 {offsets = [0, 7], sizes = [16, 1], strides = [1, 1]} : vector<16x9xf32> to vector<16x1xf32>
    %82 = vector.broadcast %81 : vector<16x1xf32> to vector<16x512xf32>
    %83 = arith.mulf %38, %82 : vector<16x512xf32>
    %84 = arith.addf %80, %83 : vector<16x512xf32>
    %c511_i32_21 = arith.constant 511 : i32
    %85 = tpu.dynamic_rotate %38 by %c511_i32_21 dim 1 : vector<16x512xf32>, i32 -> vector<16x512xf32>
    %86 = vector.broadcast %31 : vector<1x512xf32> to vector<16x512xf32>
    %87 = arith.mulf %85, %86 : vector<16x512xf32>
    %88 = vector.extract_strided_slice %32 {offsets = [0, 8], sizes = [16, 1], strides = [1, 1]} : vector<16x9xf32> to vector<16x1xf32>
    %89 = vector.broadcast %88 : vector<16x1xf32> to vector<16x512xf32>
    %90 = arith.mulf %87, %89 : vector<16x512xf32>
    %91 = arith.addf %84, %90 : vector<16x512xf32>
    %c0_22 = arith.constant 0 : index
    %c0_23 = arith.constant 0 : index
    %92 = vector.load %arg5[%c0_22, %c0_23] : memref<16x1xf32, #tpu.memory_space<vmem>>, vector<16x1xf32>
    %c0_24 = arith.constant 0 : index
    %c0_25 = arith.constant 0 : index
    %93 = vector.load %arg6[%c0_24, %c0_25] : memref<16x1xf32, #tpu.memory_space<vmem>>, vector<16x1xf32>
    %cst_26 = arith.constant dense<0.000000e+00> : vector<16x1xf32>
    %94 = tpu.matmul %91, %1, %cst_26 {dimension_numbers = #tpu.dot_dimension_numbers<[1], [0], [0], [1], [0, 0, 1, 1], [], []>} : vector<16x512xf32>, vector<512x1xf32>, vector<16x1xf32> -> vector<16x1xf32>
    %95 = arith.mulf %91, %91 : vector<16x512xf32>
    %cst_27 = arith.constant dense<0.000000e+00> : vector<16x1xf32>
    %96 = tpu.matmul %95, %1, %cst_27 {dimension_numbers = #tpu.dot_dimension_numbers<[1], [0], [0], [1], [0, 0, 1, 1], [], []>} : vector<16x512xf32>, vector<512x1xf32>, vector<16x1xf32> -> vector<16x1xf32>
    %cst_28 = arith.constant 0.001953125 : f32
    %97 = vector.broadcast %cst_28 : f32 to vector<16x1xf32>
    %98 = arith.mulf %94, %97 : vector<16x1xf32>
    %cst_29 = arith.constant 0.001953125 : f32
    %99 = vector.broadcast %cst_29 : f32 to vector<16x1xf32>
    %100 = arith.mulf %96, %99 : vector<16x1xf32>
    %101 = arith.mulf %98, %98 : vector<16x1xf32>
    %102 = arith.subf %100, %101 : vector<16x1xf32>
    %cst_30 = arith.constant 9.99999974E-6 : f32
    %103 = vector.broadcast %cst_30 : f32 to vector<16x1xf32>
    %104 = arith.addf %102, %103 : vector<16x1xf32>
    %105 = math.rsqrt %104 : vector<16x1xf32>
    %106 = arith.mulf %92, %105 : vector<16x1xf32>
    %107 = vector.broadcast %106 : vector<16x1xf32> to vector<16x512xf32>
    %108 = arith.mulf %91, %107 : vector<16x512xf32>
    %109 = arith.mulf %98, %106 : vector<16x1xf32>
    %110 = arith.subf %93, %109 : vector<16x1xf32>
    %111 = vector.broadcast %110 : vector<16x1xf32> to vector<16x512xf32>
    %112 = arith.addf %108, %111 : vector<16x512xf32>
    %c0_31 = arith.constant 0 : index
    %c0_32 = arith.constant 0 : index
    %113 = vector.load %arg7[%c0_31, %c0_32] : memref<16x16xf32, #tpu.memory_space<vmem>>, vector<16x16xf32>
    %cst_33 = arith.constant dense<0.000000e+00> : vector<16x512xf32>
    %114 = tpu.matmul %113, %112, %cst_33 {dimension_numbers = #tpu.dot_dimension_numbers<[1], [0], [0], [1], [0, 0, 1, 1], [], []>} : vector<16x16xf32>, vector<16x512xf32>, vector<16x512xf32> -> vector<16x512xf32>
    %c0_34 = arith.constant 0 : index
    %c0_35 = arith.constant 0 : index
    %115 = vector.load %arg8[%c0_34, %c0_35] : memref<16x1xf32, #tpu.memory_space<vmem>>, vector<16x1xf32>
    %c0_36 = arith.constant 0 : index
    %c0_37 = arith.constant 0 : index
    %116 = vector.load %arg9[%c0_36, %c0_37] : memref<16x1xf32, #tpu.memory_space<vmem>>, vector<16x1xf32>
    %cst_38 = arith.constant dense<0.000000e+00> : vector<16x1xf32>
    %117 = tpu.matmul %114, %1, %cst_38 {dimension_numbers = #tpu.dot_dimension_numbers<[1], [0], [0], [1], [0, 0, 1, 1], [], []>} : vector<16x512xf32>, vector<512x1xf32>, vector<16x1xf32> -> vector<16x1xf32>
    %118 = arith.mulf %114, %114 : vector<16x512xf32>
    %cst_39 = arith.constant dense<0.000000e+00> : vector<16x1xf32>
    %119 = tpu.matmul %118, %1, %cst_39 {dimension_numbers = #tpu.dot_dimension_numbers<[1], [0], [0], [1], [0, 0, 1, 1], [], []>} : vector<16x512xf32>, vector<512x1xf32>, vector<16x1xf32> -> vector<16x1xf32>
    %cst_40 = arith.constant 0.001953125 : f32
    %120 = vector.broadcast %cst_40 : f32 to vector<16x1xf32>
    %121 = arith.mulf %117, %120 : vector<16x1xf32>
    %cst_41 = arith.constant 0.001953125 : f32
    %122 = vector.broadcast %cst_41 : f32 to vector<16x1xf32>
    %123 = arith.mulf %119, %122 : vector<16x1xf32>
    %124 = arith.mulf %121, %121 : vector<16x1xf32>
    %125 = arith.subf %123, %124 : vector<16x1xf32>
    %cst_42 = arith.constant 9.99999974E-6 : f32
    %126 = vector.broadcast %cst_42 : f32 to vector<16x1xf32>
    %127 = arith.addf %125, %126 : vector<16x1xf32>
    %128 = math.rsqrt %127 : vector<16x1xf32>
    %129 = arith.mulf %115, %128 : vector<16x1xf32>
    %130 = vector.broadcast %129 : vector<16x1xf32> to vector<16x512xf32>
    %131 = arith.mulf %114, %130 : vector<16x512xf32>
    %132 = arith.mulf %121, %129 : vector<16x1xf32>
    %133 = arith.subf %116, %132 : vector<16x1xf32>
    %134 = vector.broadcast %133 : vector<16x1xf32> to vector<16x512xf32>
    %135 = arith.addf %131, %134 : vector<16x512xf32>
    %136 = arith.addf %135, %0 : vector<16x512xf32>
    %cst_43 = arith.constant 0.000000e+00 : f32
    %137 = vector.broadcast %cst_43 : f32 to vector<16x512xf32>
    %138 = arith.maximumf %136, %137 : vector<16x512xf32>
    %c0_44 = arith.constant 0 : index
    %c0_45 = arith.constant 0 : index
    %139 = vector.load %arg11[%c0_44, %c0_45] : memref<16x512xf32, #tpu.memory_space<vmem>>, vector<16x512xf32>
    tpu.vector_store %arg11[%c0_44, %c0_45], %138 {strides = array<i32>} : memref<16x512xf32, #tpu.memory_space<vmem>>, vector<16x512xf32>,
    return
  }
}

</mosaic_0001>

<llo_original>
// kernel: tpu_custom_call.1
$region0: #{tpu_custom_call.1}
  #allocation0 [shape = 'u32[]', space=smem, size = 0x4, offset = 0x4, fixed_abs, tag = 'smem constant byte address 0x4 - core index']
  #allocation1 [shape = 'u32[144,128]{1,0:T(1,128)}', space=vmem, size = 0x12000, scoped, tag = 'internal scratch']
  %s0 = inlined_call_operand.vmem [shape: f32[16,512], index: 0, kind: input, shape index: {}]
  %s1 = inlined_call_operand.vmem [shape: f32[16,16], index: 1, kind: input, shape index: {}]
  %s2 = inlined_call_operand.vmem [shape: f32[16,1], index: 2, kind: input, shape index: {}]
  %s3 = inlined_call_operand.vmem [shape: f32[16,1], index: 3, kind: input, shape index: {}]
  %s4 = inlined_call_operand.vmem [shape: f32[16,9], index: 4, kind: input, shape index: {}]
  %s5 = inlined_call_operand.vmem [shape: f32[16,1], index: 5, kind: input, shape index: {}]
  %s6 = inlined_call_operand.vmem [shape: f32[16,1], index: 6, kind: input, shape index: {}]
  %s7 = inlined_call_operand.vmem [shape: f32[16,16], index: 7, kind: input, shape index: {}]
  %s8 = inlined_call_operand.vmem [shape: f32[16,1], index: 8, kind: input, shape index: {}]
  %s9 = inlined_call_operand.vmem [shape: f32[16,1], index: 9, kind: input, shape index: {}]
  %s10 = inlined_call_operand.hbm [shape: f32[4,512], index: 10, kind: input, shape index: {}]
  %s11 = inlined_call_operand.hbm [shape: f32[16,512], index: 11, kind: output, shape index: {}]
  %s12 = sld [smem:[#allocation0]]
  $region58: #{tpu_custom_call.1} parent=0
    _
  %s14 = ssub.s32 1, %s12
  %s15 = scalar_select 0, %s14, %s12
  $region1: #{tpu_custom_call.1} parent=0
    #allocation2 [shape = 'u8[8192]{0}', space=vmem, size = 0x2000, scoped, tag = 'input window, operand 10, single buffered']
    #allocation3 [shape = 's32[1]{0}', space=sflag, size = 0x4, scoped, tag = 'scoped memory for tpu_custom_call.1']
    #allocation4 [shape = 's32[1]{0}', space=sflag, size = 0x4, scoped, tag = 'scoped memory for tpu_custom_call.1']
    #allocation5 [shape = 'u8[32768]{0}', space=vmem, size = 0x8000, scoped, tag = 'output window, operand 0, single buffered']
    %16 = vsyncpa [#allocation3], 0
    %17 = vsyncpa [#allocation4], 0
    // Predicated region
    $region2: #{tpu_custom_call.1} parent=1 // pred_check
      _
    $region3: #{tpu_custom_call.1} parent=1 // pred_check_branch
      %19 = sbr.rel (0) target = $region5
    $region4: #{tpu_custom_call.1} parent=1 // pred_region
      _
    $region5: #{tpu_custom_call.1} parent=1 // pred_fallthru
      _
    // Predicated region
    $region6: #{tpu_custom_call.1} parent=1 // pred_check
      _
    $region7: #{tpu_custom_call.1} parent=1 // pred_check_branch
      %21 = sbr.rel (0) target = $region9
    $region8: #{tpu_custom_call.1} parent=1 // pred_region
      _
    $region9: #{tpu_custom_call.1} parent=1 // pred_fallthru
      _
    // Predicated region
    $region10: #{tpu_custom_call.1} parent=1 // pred_check
      _
    $region11: #{tpu_custom_call.1} parent=1 // pred_check_branch
      %23 = sbr.rel (0) target = $region13
    $region12: #{tpu_custom_call.1} parent=1 // pred_region
      _
    $region13: #{tpu_custom_call.1} parent=1 // pred_fallthru
      _
    // Predicated region
    $region14: #{tpu_custom_call.1} parent=1 // pred_check
      _
    $region15: #{tpu_custom_call.1} parent=1 // pred_check_branch
      %25 = sbr.rel (0) target = $region17
    $region16: #{tpu_custom_call.1} parent=1 // pred_region
      _
    $region17: #{tpu_custom_call.1} parent=1 // pred_fallthru
      _
    // Predicated region
    $region18: #{tpu_custom_call.1} parent=1 // pred_check
      _
    $region19: #{tpu_custom_call.1} parent=1 // pred_check_branch
      %27 = sbr.rel (0) target = $region21
    $region20: #{tpu_custom_call.1} parent=1 // pred_region
      _
    $region21: #{tpu_custom_call.1} parent=1 // pred_fallthru
      _
    // Predicated region
    $region22: #{tpu_custom_call.1} parent=1 // pred_check
      _
    $region23: #{tpu_custom_call.1} parent=1 // pred_check_branch
      %29 = sbr.rel (0) target = $region25
    $region24: #{tpu_custom_call.1} parent=1 // pred_region
      _
    $region25: #{tpu_custom_call.1} parent=1 // pred_fallthru
      _
    // Predicated region
    $region26: #{tpu_custom_call.1} parent=1 // pred_check
      _
    $region27: #{tpu_custom_call.1} parent=1 // pred_check_branch
      %31 = sbr.rel (0) target = $region29
    $region28: #{tpu_custom_call.1} parent=1 // pred_region
      _
    $region29: #{tpu_custom_call.1} parent=1 // pred_fallthru
      _
    // Predicated region
    $region30: #{tpu_custom_call.1} parent=1 // pred_check
      _
    $region31: #{tpu_custom_call.1} parent=1 // pred_check_branch
      %33 = sbr.rel (0) target = $region33
    $region32: #{tpu_custom_call.1} parent=1 // pred_region
      _
    $region33: #{tpu_custom_call.1} parent=1 // pred_fallthru
      _
    // Predicated region
    $region34: #{tpu_custom_call.1} parent=1 // pred_check
      _
    $region35: #{tpu_custom_call.1} parent=1 // pred_check_branch
      %35 = sbr.rel (0) target = $region37
    $region36: #{tpu_custom_call.1} parent=1 // pred_region
      _
    $region37: #{tpu_custom_call.1} parent=1 // pred_fallthru
      _
    // Predicated region
    $region38: #{tpu_custom_call.1} parent=1 // pred_check
      _
    $region39: #{tpu_custom_call.1} parent=1 // pred_check_branch
      %37 = sbr.rel (0) target = $region41
    $region40: #{tpu_custom_call.1} parent=1 // pred_region
      _
    $region41: #{tpu_custom_call.1} parent=1 // pred_fallthru
      _
    // Predicated region
    $region42: #{tpu_custom_call.1} parent=1 // pred_check
      _
    $region43: #{tpu_custom_call.1} parent=1 // pred_check_branch
      %39 = sbr.rel (0) target = $region45
    $region44: #{tpu_custom_call.1} parent=1 // pred_region
      %s41 = ssub.s32 256, 256
      %42 = vsyncadd [#allocation3], %s41
      %s44 = sshll.u32 [#allocation2], 4
      %s45 = int_to_ptr.vmem [resolvable:$true] %s44
      %47 = dma.hbm_to_vmem [thread:$0]  %s10, 256, %s45, [#allocation3]
    $region45: #{tpu_custom_call.1} parent=1 // pred_fallthru
      _
    // Predicated region
    $region46: #{tpu_custom_call.1} parent=1 // pred_check
      _
    $region47: #{tpu_custom_call.1} parent=1 // pred_check_branch
      %49 = sbr.rel (0) target = $region49
    $region48: #{tpu_custom_call.1} parent=1 // pred_region
      %50 = dma.done [#allocation3], 256
    $region49: #{tpu_custom_call.1} parent=1 // pred_fallthru
      _
    %v51 = vld [vmem:[%s0] sm:$0xff]
    %v52 = vld [vmem:[%s0 + $0x8] sm:$0xff]
    %v53 = vld [vmem:[%s0 + $0x10] sm:$0xff]
    %v54 = vld [vmem:[%s0 + $0x18] sm:$0xff]
    %v55 = vld [vmem:[%s0 + $0x20] sm:$0xff]
    %v56 = vld [vmem:[%s0 + $0x28] sm:$0xff]
    %v57 = vld [vmem:[%s0 + $0x30] sm:$0xff]
    %v58 = vld [vmem:[%s0 + $0x38] sm:$0xff]
    %v59 = vld [vmem:[%s1] sm:$0xff]
    %v60 = vld [vmem:[%s1 + $0x8] sm:$0xff]
    %vm61 = vcmask 130048
    %v63 = vsel %vm61, %v59, 0
    %v66 = vsel %vm61, %v60, 0
    %68 = vmatprep.subr.mxu0 0.0
    %69 = vmatpush1.msra.mxu0 0.0
    %70 = vmatprep.subr.mxu0 0.0
    %71 = vmatpush1.msra.mxu0 0.0
    %72 = vmatprep.subr.mxu0 0.0
    %73 = vmatpush1.msra.mxu0 0.0
    %74 = vmatprep.subr.mxu0 0.0
    %75 = vmatpush1.msra.mxu0 0.0
    %76 = vmatprep.subr.mxu0 0.0
    %77 = vmatpush1.msra.mxu0 0.0
    %78 = vmatprep.subr.mxu0 0.0
    %79 = vmatpush1.msra.mxu0 0.0
    %80 = vmatprep.subr.mxu0 0.0
    %81 = vmatpush1.msra.mxu0 0.0
    %82 = vmatprep.subr.mxu0 0.0
    %83 = vmatpush1.msra.mxu0 0.0
    %84 = vmatprep.subr.mxu0 0.0
    %85 = vmatpush1.msra.mxu0 0.0
    %86 = vmatprep.subr.mxu0 0.0
    %87 = vmatpush1.msra.mxu0 0.0
    %88 = vmatprep.subr.mxu0 0.0
    %89 = vmatpush1.msra.mxu0 0.0
    %90 = vmatprep.subr.mxu0 0.0
    %91 = vmatpush1.msra.mxu0 0.0
    %92 = vmatprep.subr.mxu0 0.0
    %93 = vmatpush1.msra.mxu0 0.0
    %94 = vmatprep.subr.mxu0 0.0
    %95 = vmatpush1.msra.mxu0 0.0
    %96 = vmatprep.subr.mxu0 %v56
    %97 = vmatpush1.msra.mxu0 %v55
    %98 = vmatprep.subr.mxu0 %v52
    %99 = vmatpush1.msra.mxu0 %v51
    %100 = vmatprep.subr.mxu0 0.0
    %101 = vmatpush2.msra.mxu0 0.0
    %102 = vmatprep.subr.mxu0 0.0
    %103 = vmatpush2.msra.mxu0 0.0
    %104 = vmatprep.subr.mxu0 0.0
    %105 = vmatpush2.msra.mxu0 0.0
    %106 = vmatprep.subr.mxu0 0.0
    %107 = vmatpush2.msra.mxu0 0.0
    %108 = vmatprep.subr.mxu0 0.0
    %109 = vmatpush2.msra.mxu0 0.0
    %110 = vmatprep.subr.mxu0 0.0
    %111 = vmatpush2.msra.mxu0 0.0
    %112 = vmatprep.subr.mxu0 0.0
    %113 = vmatpush2.msra.mxu0 0.0
    %114 = vmatprep.subr.mxu0 0.0
    %115 = vmatpush2.msra.mxu0 0.0
    %116 = vmatprep.subr.mxu0 0.0
    %117 = vmatpush2.msra.mxu0 0.0
    %118 = vmatprep.subr.mxu0 0.0
    %119 = vmatpush2.msra.mxu0 0.0
    %120 = vmatprep.subr.mxu0 0.0
    %121 = vmatpush2.msra.mxu0 0.0
    %122 = vmatprep.subr.mxu0 0.0
    %123 = vmatpush2.msra.mxu0 0.0
    %124 = vmatprep.subr.mxu0 0.0
    %125 = vmatpush2.msra.mxu0 0.0
    %126 = vmatprep.subr.mxu0 0.0
    %127 = vmatpush2.msra.mxu0 0.0
    %128 = vmatprep.subr.mxu0 0.0
    %129 = vmatpush2.msra.mxu0 0.0
    %130 = vmatprep.subr.mxu0 0.0
    %131 = vmatpush2.msra.mxu0 0.0
    %132 = vmatprep.mubr.f32.mxu0 0.0
    %133 = vmatmul.mubr.f32.gmra.mxu0 %v63
    %v134 = vpop.f32.mrf.mxu0
    %v135 = vadd.f32 0.0, %v134
    %v136 = vpop.f32.mrf.mxu0
    %v137 = vadd.f32 0.0, %v136
    %138 = vmatprep.mubr.f32.mxu0 0.0
    %139 = vmatmul.mubr.f32.gmra.mxu0 %v66
    %v140 = vpop.f32.mrf.mxu0
    %v141 = vadd.f32 0.0, %v140
    %v142 = vpop.f32.mrf.mxu0
    %v143 = vadd.f32 0.0, %v142
    %144 = vdwg.mxu0
    %145 = vmatprep.subr.mxu0 0.0
    %146 = vmatpush1.msra.mxu0 0.0
    %147 = vmatprep.subr.mxu0 0.0
    %148 = vmatpush1.msra.mxu0 0.0
    %149 = vmatprep.subr.mxu0 0.0
    %150 = vmatpush1.msra.mxu0 0.0
    %151 = vmatprep.subr.mxu0 0.0
    %152 = vmatpush1.msra.mxu0 0.0
    %153 = vmatprep.subr.mxu0 0.0
    %154 = vmatpush1.msra.mxu0 0.0
    %155 = vmatprep.subr.mxu0 0.0
    %156 = vmatpush1.msra.mxu0 0.0
    %157 = vmatprep.subr.mxu0 0.0
    %158 = vmatpush1.msra.mxu0 0.0
    %159 = vmatprep.subr.mxu0 0.0
    %160 = vmatpush1.msra.mxu0 0.0
    %161 = vmatprep.subr.mxu0 0.0
    %162 = vmatpush1.msra.mxu0 0.0
    %163 = vmatprep.subr.mxu0 0.0
    %164 = vmatpush1.msra.mxu0 0.0
    %165 = vmatprep.subr.mxu0 0.0
    %166 = vmatpush1.msra.mxu0 0.0
    %167 = vmatprep.subr.mxu0 0.0
    %168 = vmatpush1.msra.mxu0 0.0
    %169 = vmatprep.subr.mxu0 0.0
    %170 = vmatpush1.msra.mxu0 0.0
    %171 = vmatprep.subr.mxu0 0.0
    %172 = vmatpush1.msra.mxu0 0.0
    %173 = vmatprep.subr.mxu0 %v58
    %174 = vmatpush1.msra.mxu0 %v57
    %175 = vmatprep.subr.mxu0 %v54
    %176 = vmatpush1.msra.mxu0 %v53
    %177 = vmatprep.subr.mxu0 0.0
    %178 = vmatpush2.msra.mxu0 0.0
    %179 = vmatprep.subr.mxu0 0.0
    %180 = vmatpush2.msra.mxu0 0.0
    %181 = vmatprep.subr.mxu0 0.0
    %182 = vmatpush2.msra.mxu0 0.0
    %183 = vmatprep.subr.mxu0 0.0
    %184 = vmatpush2.msra.mxu0 0.0
    %185 = vmatprep.subr.mxu0 0.0
    %186 = vmatpush2.msra.mxu0 0.0
    %187 = vmatprep.subr.mxu0 0.0
    %188 = vmatpush2.msra.mxu0 0.0
    %189 = vmatprep.subr.mxu0 0.0
    %190 = vmatpush2.msra.mxu0 0.0
    %191 = vmatprep.subr.mxu0 0.0
    %192 = vmatpush2.msra.mxu0 0.0
    %193 = vmatprep.subr.mxu0 0.0
    %194 = vmatpush2.msra.mxu0 0.0
    %195 = vmatprep.subr.mxu0 0.0
    %196 = vmatpush2.msra.mxu0 0.0
    %197 = vmatprep.subr.mxu0 0.0
    %198 = vmatpush2.msra.mxu0 0.0
    %199 = vmatprep.subr.mxu0 0.0
    %200 = vmatpush2.msra.mxu0 0.0
    %201 = vmatprep.subr.mxu0 0.0
    %202 = vmatpush2.msra.mxu0 0.0
    %203 = vmatprep.subr.mxu0 0.0
    %204 = vmatpush2.msra.mxu0 0.0
    %205 = vmatprep.subr.mxu0 0.0
    %206 = vmatpush2.msra.mxu0 0.0
    %207 = vmatprep.subr.mxu0 0.0
    %208 = vmatpush2.msra.mxu0 0.0
    %209 = vmatprep.mubr.f32.mxu0 0.0
    %210 = vmatmul.mubr.f32.gmra.mxu0 %v63
    %v211 = vpop.f32.mrf.mxu0
    %v212 = vadd.f32 0.0, %v211
    %v213 = vpop.f32.mrf.mxu0
    %v214 = vadd.f32 0.0, %v213
    %215 = vmatprep.mubr.f32.mxu0 0.0
    %216 = vmatmul.mubr.f32.gmra.mxu0 %v66
    %v217 = vpop.f32.mrf.mxu0
    %v218 = vadd.f32 0.0, %v217
    %v219 = vpop.f32.mrf.mxu0
    %v220 = vadd.f32 0.0, %v219
    %221 = vdwg.mxu0
    %v222 = vld [vmem:[%s2] sm:$0xff]
    %v223 = vld [vmem:[%s2 + $0x8] sm:$0xff]
    %v224 = vld [vmem:[%s3] sm:$0xff]
    %v225 = vld [vmem:[%s3 + $0x8] sm:$0xff]
    %226 = vmatprep.subr.mxu0 0.0
    %227 = vmatpush1.msra.mxu0 1.0
    %228 = vmatprep.subr.mxu0 0.0
    %229 = vmatpush1.msra.mxu0 1.0
    %230 = vmatprep.subr.mxu0 0.0
    %231 = vmatpush1.msra.mxu0 1.0
    %232 = vmatprep.subr.mxu0 0.0
    %233 = vmatpush1.msra.mxu0 1.0
    %234 = vmatprep.subr.mxu0 0.0
    %235 = vmatpush1.msra.mxu0 1.0
    %236 = vmatprep.subr.mxu0 0.0
    %237 = vmatpush1.msra.mxu0 1.0
    %238 = vmatprep.subr.mxu0 0.0
    %239 = vmatpush1.msra.mxu0 1.0
    %240 = vmatprep.subr.mxu0 0.0
    %241 = vmatpush1.msra.mxu0 1.0
    %242 = vmatprep.subr.mxu0 0.0
    %243 = vmatpush1.msra.mxu0 1.0
    %244 = vmatprep.subr.mxu0 0.0
    %245 = vmatpush1.msra.mxu0 1.0
    %246 = vmatprep.subr.mxu0 0.0
    %247 = vmatpush1.msra.mxu0 1.0
    %248 = vmatprep.subr.mxu0 0.0
    %249 = vmatpush1.msra.mxu0 1.0
    %250 = vmatprep.subr.mxu0 0.0
    %251 = vmatpush1.msra.mxu0 1.0
    %252 = vmatprep.subr.mxu0 0.0
    %253 = vmatpush1.msra.mxu0 1.0
    %254 = vmatprep.subr.mxu0 0.0
    %255 = vmatpush1.msra.mxu0 1.0
    %256 = vmatprep.subr.mxu0 0.0
    %257 = vmatpush1.msra.mxu0 1.0
    %258 = vmatprep.subr.mxu0 0.0
    %259 = vmatpush2.msra.mxu0 1.0
    %260 = vmatprep.subr.mxu0 0.0
    %261 = vmatpush2.msra.mxu0 1.0
    %262 = vmatprep.subr.mxu0 0.0
    %263 = vmatpush2.msra.mxu0 1.0
    %264 = vmatprep.subr.mxu0 0.0
    %265 = vmatpush2.msra.mxu0 1.0
    %266 = vmatprep.subr.mxu0 0.0
    %267 = vmatpush2.msra.mxu0 1.0
    %268 = vmatprep.subr.mxu0 0.0
    %269 = vmatpush2.msra.mxu0 1.0
    %270 = vmatprep.subr.mxu0 0.0
    %271 = vmatpush2.msra.mxu0 1.0
    %272 = vmatprep.subr.mxu0 0.0
    %273 = vmatpush2.msra.mxu0 1.0
    %274 = vmatprep.subr.mxu0 0.0
    %275 = vmatpush2.msra.mxu0 1.0
    %276 = vmatprep.subr.mxu0 0.0
    %277 = vmatpush2.msra.mxu0 1.0
    %278 = vmatprep.subr.mxu0 0.0
    %279 = vmatpush2.msra.mxu0 1.0
    %280 = vmatprep.subr.mxu0 0.0
    %281 = vmatpush2.msra.mxu0 1.0
    %282 = vmatprep.subr.mxu0 0.0
    %283 = vmatpush2.msra.mxu0 1.0
    %284 = vmatprep.subr.mxu0 0.0
    %285 = vmatpush2.msra.mxu0 1.0
    %286 = vmatprep.subr.mxu0 0.0
    %287 = vmatpush2.msra.mxu0 1.0
    %288 = vmatprep.subr.mxu0 0.0
    %289 = vmatpush2.msra.mxu0 1.0
    %290 = vmatprep.mubr.f32.mxu0 %v137
    %291 = vmatmul.mubr.f32.gmra.mxu0 %v135
    %v292 = vpop.f32.mrf.mxu0
    %v293 = vadd.f32 0.0, %v292
    %v294 = vpop.f32.mrf.mxu0
    %295 = vmatprep.mubr.f32.mxu0 %v143
    %296 = vmatmul.mubr.f32.gmra.mxu0 %v141
    %v297 = vpop.f32.mrf.mxu0
    %v298 = vadd.f32 0.0, %v297
    %v299 = vpop.f32.mrf.mxu0
    %300 = vdwg.mxu0
    %301 = vmatprep.subr.mxu0 0.0
    %302 = vmatpush1.msra.mxu0 1.0
    %303 = vmatprep.subr.mxu0 0.0
    %304 = vmatpush1.msra.mxu0 1.0
    %305 = vmatprep.subr.mxu0 0.0
    %306 = vmatpush1.msra.mxu0 1.0
    %307 = vmatprep.subr.mxu0 0.0
    %308 = vmatpush1.msra.mxu0 1.0
    %309 = vmatprep.subr.mxu0 0.0
    %310 = vmatpush1.msra.mxu0 1.0
    %311 = vmatprep.subr.mxu0 0.0
    %312 = vmatpush1.msra.mxu0 1.0
    %313 = vmatprep.subr.mxu0 0.0
    %314 = vmatpush1.msra.mxu0 1.0
    %315 = vmatprep.subr.mxu0 0.0
    %316 = vmatpush1.msra.mxu0 1.0
    %317 = vmatprep.subr.mxu0 0.0
    %318 = vmatpush1.msra.mxu0 1.0
    %319 = vmatprep.subr.mxu0 0.0
    %320 = vmatpush1.msra.mxu0 1.0
    %321 = vmatprep.subr.mxu0 0.0
    %322 = vmatpush1.msra.mxu0 1.0
    %323 = vmatprep.subr.mxu0 0.0
    %324 = vmatpush1.msra.mxu0 1.0
    %325 = vmatprep.subr.mxu0 0.0
    %326 = vmatpush1.msra.mxu0 1.0
    %327 = vmatprep.subr.mxu0 0.0
    %328 = vmatpush1.msra.mxu0 1.0
    %329 = vmatprep.subr.mxu0 0.0
    %330 = vmatpush1.msra.mxu0 1.0
    %331 = vmatprep.subr.mxu0 0.0
    %332 = vmatpush1.msra.mxu0 1.0
    %333 = vmatprep.subr.mxu0 0.0
    %334 = vmatpush2.msra.mxu0 1.0
    %335 = vmatprep.subr.mxu0 0.0
    %336 = vmatpush2.msra.mxu0 1.0
    %337 = vmatprep.subr.mxu0 0.0
    %338 = vmatpush2.msra.mxu0 1.0
    %339 = vmatprep.subr.mxu0 0.0
    %340 = vmatpush2.msra.mxu0 1.0
    %341 = vmatprep.subr.mxu0 0.0
    %342 = vmatpush2.msra.mxu0 1.0
    %343 = vmatprep.subr.mxu0 0.0
    %344 = vmatpush2.msra.mxu0 1.0
    %345 = vmatprep.subr.mxu0 0.0
    %346 = vmatpush2.msra.mxu0 1.0
    %347 = vmatprep.subr.mxu0 0.0
    %348 = vmatpush2.msra.mxu0 1.0
    %349 = vmatprep.subr.mxu0 0.0
    %350 = vmatpush2.msra.mxu0 1.0
    %351 = vmatprep.subr.mxu0 0.0
    %352 = vmatpush2.msra.mxu0 1.0
    %353 = vmatprep.subr.mxu0 0.0
    %354 = vmatpush2.msra.mxu0 1.0
    %355 = vmatprep.subr.mxu0 0.0
    %356 = vmatpush2.msra.mxu0 1.0
    %357 = vmatprep.subr.mxu0 0.0
    %358 = vmatpush2.msra.mxu0 1.0
    %359 = vmatprep.subr.mxu0 0.0
    %360 = vmatpush2.msra.mxu0 1.0
    %361 = vmatprep.subr.mxu0 0.0
    %362 = vmatpush2.msra.mxu0 1.0
    %363 = vmatprep.subr.mxu0 0.0
    %364 = vmatpush2.msra.mxu0 1.0
    %365 = vmatprep.mubr.f32.mxu0 %v214
    %366 = vmatmul.mubr.f32.gmra.mxu0 %v212
    %v367 = vpop.f32.mrf.mxu0
    %v368 = vadd.f32 %v293, %v367
    %v369 = vpop.f32.mrf.mxu0
    %370 = vmatprep.mubr.f32.mxu0 %v220
    %371 = vmatmul.mubr.f32.gmra.mxu0 %v218
    %v372 = vpop.f32.mrf.mxu0
    %v373 = vadd.f32 %v298, %v372
    %v374 = vpop.f32.mrf.mxu0
    %375 = vdwg.mxu0
    %v376 = vmul.f32 %v135, %v135
    %v377 = vmul.f32 %v137, %v137
    %v378 = vmul.f32 %v212, %v212
    %v379 = vmul.f32 %v214, %v214
    %v380 = vmul.f32 %v141, %v141
    %v381 = vmul.f32 %v143, %v143
    %v382 = vmul.f32 %v218, %v218
    %v383 = vmul.f32 %v220, %v220
    %384 = vmatprep.subr.mxu0 0.0
    %385 = vmatpush1.msra.mxu0 1.0
    %386 = vmatprep.subr.mxu0 0.0
    %387 = vmatpush1.msra.mxu0 1.0
    %388 = vmatprep.subr.mxu0 0.0
    %389 = vmatpush1.msra.mxu0 1.0
    %390 = vmatprep.subr.mxu0 0.0
    %391 = vmatpush1.msra.mxu0 1.0
    %392 = vmatprep.subr.mxu0 0.0
    %393 = vmatpush1.msra.mxu0 1.0
    %394 = vmatprep.subr.mxu0 0.0
    %395 = vmatpush1.msra.mxu0 1.0
    %396 = vmatprep.subr.mxu0 0.0
    %397 = vmatpush1.msra.mxu0 1.0
    %398 = vmatprep.subr.mxu0 0.0
    %399 = vmatpush1.msra.mxu0 1.0
    %400 = vmatprep.subr.mxu0 0.0
    %401 = vmatpush1.msra.mxu0 1.0
    %402 = vmatprep.subr.mxu0 0.0
    %403 = vmatpush1.msra.mxu0 1.0
    %404 = vmatprep.subr.mxu0 0.0
    %405 = vmatpush1.msra.mxu0 1.0
    %406 = vmatprep.subr.mxu0 0.0
    %407 = vmatpush1.msra.mxu0 1.0
    %408 = vmatprep.subr.mxu0 0.0
    %409 = vmatpush1.msra.mxu0 1.0
    %410 = vmatprep.subr.mxu0 0.0
    %411 = vmatpush1.msra.mxu0 1.0
    %412 = vmatprep.subr.mxu0 0.0
    %413 = vmatpush1.msra.mxu0 1.0
    %414 = vmatprep.subr.mxu0 0.0
    %415 = vmatpush1.msra.mxu0 1.0
    %416 = vmatprep.subr.mxu0 0.0
    %417 = vmatpush2.msra.mxu0 1.0
    %418 = vmatprep.subr.mxu0 0.0
    %419 = vmatpush2.msra.mxu0 1.0
    %420 = vmatprep.subr.mxu0 0.0
    %421 = vmatpush2.msra.mxu0 1.0
    %422 = vmatprep.subr.mxu0 0.0
    %423 = vmatpush2.msra.mxu0 1.0
    %424 = vmatprep.subr.mxu0 0.0
    %425 = vmatpush2.msra.mxu0 1.0
    %426 = vmatprep.subr.mxu0 0.0
    %427 = vmatpush2.msra.mxu0 1.0
    %428 = vmatprep.subr.mxu0 0.0
    %429 = vmatpush2.msra.mxu0 1.0
    %430 = vmatprep.subr.mxu0 0.0
    %431 = vmatpush2.msra.mxu0 1.0
    %432 = vmatprep.subr.mxu0 0.0
    %433 = vmatpush2.msra.mxu0 1.0
    %434 = vmatprep.subr.mxu0 0.0
    %435 = vmatpush2.msra.mxu0 1.0
    %436 = vmatprep.subr.mxu0 0.0
    %437 = vmatpush2.msra.mxu0 1.0
    %438 = vmatprep.subr.mxu0 0.0
    %439 = vmatpush2.msra.mxu0 1.0
    %440 = vmatprep.subr.mxu0 0.0
    %441 = vmatpush2.msra.mxu0 1.0
    %442 = vmatprep.subr.mxu0 0.0
    %443 = vmatpush2.msra.mxu0 1.0
    %444 = vmatprep.subr.mxu0 0.0
    %445 = vmatpush2.msra.mxu0 1.0
    %446 = vmatprep.subr.mxu0 0.0
    %447 = vmatpush2.msra.mxu0 1.0
    %448 = vmatprep.mubr.f32.mxu0 %v377
    %449 = vmatmul.mubr.f32.gmra.mxu0 %v376
    %v450 = vpop.f32.mrf.mxu0
    %v451 = vadd.f32 0.0, %v450
    %v452 = vpop.f32.mrf.mxu0
    %453 = vmatprep.mubr.f32.mxu0 %v381
    %454 = vmatmul.mubr.f32.gmra.mxu0 %v380
    %v455 = vpop.f32.mrf.mxu0
    %v456 = vadd.f32 0.0, %v455
    %v457 = vpop.f32.mrf.mxu0
    %458 = vdwg.mxu0
    %459 = vmatprep.subr.mxu0 0.0
    %460 = vmatpush1.msra.mxu0 1.0
    %461 = vmatprep.subr.mxu0 0.0
    %462 = vmatpush1.msra.mxu0 1.0
    %463 = vmatprep.subr.mxu0 0.0
    %464 = vmatpush1.msra.mxu0 1.0
    %465 = vmatprep.subr.mxu0 0.0
    %466 = vmatpush1.msra.mxu0 1.0
    %467 = vmatprep.subr.mxu0 0.0
    %468 = vmatpush1.msra.mxu0 1.0
    %469 = vmatprep.subr.mxu0 0.0
    %470 = vmatpush1.msra.mxu0 1.0
    %471 = vmatprep.subr.mxu0 0.0
    %472 = vmatpush1.msra.mxu0 1.0
    %473 = vmatprep.subr.mxu0 0.0
    %474 = vmatpush1.msra.mxu0 1.0
    %475 = vmatprep.subr.mxu0 0.0
    %476 = vmatpush1.msra.mxu0 1.0
    %477 = vmatprep.subr.mxu0 0.0
    %478 = vmatpush1.msra.mxu0 1.0
    %479 = vmatprep.subr.mxu0 0.0
    %480 = vmatpush1.msra.mxu0 1.0
    %481 = vmatprep.subr.mxu0 0.0
    %482 = vmatpush1.msra.mxu0 1.0
    %483 = vmatprep.subr.mxu0 0.0
    %484 = vmatpush1.msra.mxu0 1.0
    %485 = vmatprep.subr.mxu0 0.0
    %486 = vmatpush1.msra.mxu0 1.0
    %487 = vmatprep.subr.mxu0 0.0
    %488 = vmatpush1.msra.mxu0 1.0
    %489 = vmatprep.subr.mxu0 0.0
    %490 = vmatpush1.msra.mxu0 1.0
    %491 = vmatprep.subr.mxu0 0.0
    %492 = vmatpush2.msra.mxu0 1.0
    %493 = vmatprep.subr.mxu0 0.0
    %494 = vmatpush2.msra.mxu0 1.0
    %495 = vmatprep.subr.mxu0 0.0
    %496 = vmatpush2.msra.mxu0 1.0
    %497 = vmatprep.subr.mxu0 0.0
    %498 = vmatpush2.msra.mxu0 1.0
    %499 = vmatprep.subr.mxu0 0.0
    %500 = vmatpush2.msra.mxu0 1.0
    %501 = vmatprep.subr.mxu0 0.0
    %502 = vmatpush2.msra.mxu0 1.0
    %503 = vmatprep.subr.mxu0 0.0
    %504 = vmatpush2.msra.mxu0 1.0
    %505 = vmatprep.subr.mxu0 0.0
    %506 = vmatpush2.msra.mxu0 1.0
    %507 = vmatprep.subr.mxu0 0.0
    %508 = vmatpush2.msra.mxu0 1.0
    %509 = vmatprep.subr.mxu0 0.0
    %510 = vmatpush2.msra.mxu0 1.0
    %511 = vmatprep.subr.mxu0 0.0
    %512 = vmatpush2.msra.mxu0 1.0
    %513 = vmatprep.subr.mxu0 0.0
    %514 = vmatpush2.msra.mxu0 1.0
    %515 = vmatprep.subr.mxu0 0.0
    %516 = vmatpush2.msra.mxu0 1.0
    %517 = vmatprep.subr.mxu0 0.0
    %518 = vmatpush2.msra.mxu0 1.0
    %519 = vmatprep.subr.mxu0 0.0
    %520 = vmatpush2.msra.mxu0 1.0
    %521 = vmatprep.subr.mxu0 0.0
    %522 = vmatpush2.msra.mxu0 1.0
    %523 = vmatprep.mubr.f32.mxu0 %v379
    %524 = vmatmul.mubr.f32.gmra.mxu0 %v378
    %v525 = vpop.f32.mrf.mxu0
    %v526 = vadd.f32 %v451, %v525
    %v527 = vpop.f32.mrf.mxu0
    %528 = vmatprep.mubr.f32.mxu0 %v383
    %529 = vmatmul.mubr.f32.gmra.mxu0 %v382
    %v530 = vpop.f32.mrf.mxu0
    %v531 = vadd.f32 %v456, %v530
    %v532 = vpop.f32.mrf.mxu0
    %533 = vdwg.mxu0
    %v534 = vmul.f32 %v368, 0.001953125
    %v535 = vmul.f32 %v373, 0.001953125
    %v536 = vmul.f32 %v526, 0.001953125
    %v537 = vmul.f32 %v531, 0.001953125
    %v538 = vmul.f32 %v534, %v534
    %v539 = vmul.f32 %v535, %v535
    %v540 = vsub.f32 %v536, %v538
    %v541 = vsub.f32 %v537, %v539
    %v542 = vadd.f32 %v540, 1e-05
    %v543 = vadd.f32 %v541, 1e-05
    %v544 = vrsqrt.pop %v542
    %v545 = vrsqrt.pop %v543
    %v546 = vmul.f32 %v222, %v544
    %v547 = vmul.f32 %v223, %v545
    %549 = vset.pattern.permute.xlu0 0
    %550 = vperm.xlu0 %549, %v546
    %v551 = vpop.permute.xlu0 %550
    %554 = vset.pattern.permute.xlu0 0
    %555 = vperm.xlu0 %554, %v547
    %v556 = vpop.permute.xlu0 %555
    %v558 = vmul.f32 %v135, %v551
    %v559 = vmul.f32 %v137, %v551
    %v560 = vmul.f32 %v212, %v551
    %v561 = vmul.f32 %v214, %v551
    %v562 = vmul.f32 %v141, %v556
    %v563 = vmul.f32 %v143, %v556
    %v564 = vmul.f32 %v218, %v556
    %v565 = vmul.f32 %v220, %v556
    %v566 = vmul.f32 %v534, %v546
    %v567 = vmul.f32 %v535, %v547
    %v568 = vsub.f32 %v224, %v566
    %v569 = vsub.f32 %v225, %v567
    %571 = vset.pattern.permute.xlu0 0
    %572 = vperm.xlu0 %571, %v568
    %v573 = vpop.permute.xlu0 %572
    %576 = vset.pattern.permute.xlu0 0
    %577 = vperm.xlu0 %576, %v569
    %v578 = vpop.permute.xlu0 %577
    %v580 = vadd.f32 %v558, %v573
    %v581 = vadd.f32 %v559, %v573
    %v582 = vadd.f32 %v560, %v573
    %v583 = vadd.f32 %v561, %v573
    %v584 = vadd.f32 %v562, %v578
    %v585 = vadd.f32 %v563, %v578
    %v586 = vadd.f32 %v564, %v578
    %v587 = vadd.f32 %v565, %v578
    %v588 = vmax.f32 %v580, 0.0
    %v589 = vmax.f32 %v581, 0.0
    %v590 = vmax.f32 %v582, 0.0
    %v591 = vmax.f32 %v583, 0.0
    %v592 = vmax.f32 %v584, 0.0
    %v593 = vmax.f32 %v585, 0.0
    %v594 = vmax.f32 %v586, 0.0
    %v595 = vmax.f32 %v587, 0.0
    %v596 = vld [vmem:[#allocation2] sm:$0xff]
    %v597 = vld [vmem:[#allocation2 + $0x8] sm:$0xff]
    %v598 = vld [vmem:[%s4] sm:$0xff]
    %v599 = vld [vmem:[%s4 + $0x8] sm:$0xff]
    %600 = vrot.lane.b32.xlu0 %v588, 16
    %v601 = vpop.permute.xlu0 %600
    %602 = vrot.lane.b32.xlu0 %v592, 16
    %v603 = vpop.permute.xlu0 %602
    %604 = vrot.lane.b32.xlu0 %v589, 16
    %v605 = vpop.permute.xlu0 %604
    %606 = vrot.lane.b32.xlu0 %v593, 16
    %v607 = vpop.permute.xlu0 %606
    %608 = vrot.lane.b32.xlu0 %v590, 16
    %v609 = vpop.permute.xlu0 %608
    %610 = vrot.lane.b32.xlu0 %v594, 16
    %v611 = vpop.permute.xlu0 %610
    %612 = vrot.lane.b32.xlu0 %v591, 16
    %v613 = vpop.permute.xlu0 %612
    %614 = vrot.lane.b32.xlu0 %v595, 16
    %v615 = vpop.permute.xlu0 %614
    %v616 = vlaneseq
    %v617 = vand.u32 %v616, 127
    %vm618 = vcmp.lt.s32.totalorder %v617, 16
    %v619 = vsel %vm618, %v609, %v613
    %v620 = vsel %vm618, %v611, %v615
    %v621 = vsel %vm618, %v605, %v609
    %v622 = vsel %vm618, %v607, %v611
    %v623 = vsel %vm618, %v601, %v605
    %v624 = vsel %vm618, %v603, %v607
    %v625 = vsel %vm618, %v613, %v601
    %v626 = vsel %vm618, %v615, %v603
    %v629 = vlaneseq
    %v630 = vshrl.u32 %v629, 7
    %v631 = vsub.s32 0, %v630
    %v632 = vrot.slane %v596, %v631
    %v633 = vlaneseq
    %v634 = vshrl.u32 %v633, 7
    %v635 = vsub.s32 4, %v634
    %v636 = vrot.slane %v596, %v635
    %v637 = vlaneseq
    %v638 = vshrl.u32 %v637, 7
    %v639 = vsub.s32 0, %v638
    %v640 = vrot.slane %v597, %v639
    %v641 = vlaneseq
    %v642 = vshrl.u32 %v641, 7
    %v643 = vsub.s32 4, %v642
    %v644 = vrot.slane %v597, %v643
    %v649 = vlaneseq
    %v650 = vshrl.u32 %v649, 7
    %v651 = vsub.s32 0, %v650
    %v652 = vrot.slane %v632, %v651
    %v653 = vlaneseq
    %v654 = vshrl.u32 %v653, 7
    %v655 = vsub.s32 0, %v654
    %v656 = vrot.slane %v636, %v655
    %v657 = vlaneseq
    %v658 = vshrl.u32 %v657, 7
    %v659 = vsub.s32 0, %v658
    %v660 = vrot.slane %v640, %v659
    %v661 = vlaneseq
    %v662 = vshrl.u32 %v661, 7
    %v663 = vsub.s32 0, %v662
    %v664 = vrot.slane %v644, %v663
    %v665 = vmul.f32 %v625, %v652
    %v666 = vmul.f32 %v623, %v656
    %v667 = vmul.f32 %v621, %v660
    %v668 = vmul.f32 %v619, %v664
    %v669 = vmul.f32 %v626, %v652
    %v670 = vmul.f32 %v624, %v656
    %v671 = vmul.f32 %v622, %v660
    %v672 = vmul.f32 %v620, %v664
    %673 = vrot.lane.b32.xlu0 %v588, 112
    %v674 = vpop.permute.xlu0 %673
    %675 = vrot.lane.b32.xlu0 %v592, 112
    %v676 = vpop.permute.xlu0 %675
    %677 = vrot.lane.b32.xlu0 %v589, 112
    %v678 = vpop.permute.xlu0 %677
    %679 = vrot.lane.b32.xlu0 %v593, 112
    %v680 = vpop.permute.xlu0 %679
    %681 = vrot.lane.b32.xlu0 %v590, 112
    %v682 = vpop.permute.xlu0 %681
    %683 = vrot.lane.b32.xlu0 %v594, 112
    %v684 = vpop.permute.xlu0 %683
    %685 = vrot.lane.b32.xlu0 %v591, 112
    %v686 = vpop.permute.xlu0 %685
    %687 = vrot.lane.b32.xlu0 %v595, 112
    %v688 = vpop.permute.xlu0 %687
    %vm689 = vcmp.lt.s32.totalorder %v617, 112
    %v690 = vsel %vm689, %v682, %v686
    %v691 = vsel %vm689, %v684, %v688
    %v692 = vsel %vm689, %v678, %v682
    %v693 = vsel %vm689, %v680, %v684
    %v694 = vsel %vm689, %v674, %v678
    %v695 = vsel %vm689, %v676, %v680
    %v696 = vsel %vm689, %v686, %v674
    %v697 = vsel %vm689, %v688, %v676
    %v698 = vlaneseq
    %v699 = vshrl.u32 %v698, 7
    %v700 = vsub.s32 1, %v699
    %v701 = vrot.slane %v596, %v700
    %v702 = vlaneseq
    %v703 = vshrl.u32 %v702, 7
    %v704 = vsub.s32 5, %v703
    %v705 = vrot.slane %v596, %v704
    %v706 = vlaneseq
    %v707 = vshrl.u32 %v706, 7
    %v708 = vsub.s32 1, %v707
    %v709 = vrot.slane %v597, %v708
    %v710 = vlaneseq
    %v711 = vshrl.u32 %v710, 7
    %v712 = vsub.s32 5, %v711
    %v713 = vrot.slane %v597, %v712
    %v718 = vlaneseq
    %v719 = vshrl.u32 %v718, 7
    %v720 = vsub.s32 1, %v719
    %v721 = vrot.slane %v701, %v720
    %v722 = vlaneseq
    %v723 = vshrl.u32 %v722, 7
    %v724 = vsub.s32 1, %v723
    %v725 = vrot.slane %v705, %v724
    %v726 = vlaneseq
    %v727 = vshrl.u32 %v726, 7
    %v728 = vsub.s32 1, %v727
    %v729 = vrot.slane %v709, %v728
    %v730 = vlaneseq
    %v731 = vshrl.u32 %v730, 7
    %v732 = vsub.s32 1, %v731
    %v733 = vrot.slane %v713, %v732
    %v734 = vmul.f32 %v694, %v721
    %v735 = vmul.f32 %v692, %v725
    %v736 = vmul.f32 %v690, %v729
    %v737 = vmul.f32 %v696, %v733
    %v738 = vmul.f32 %v695, %v721
    %v739 = vmul.f32 %v693, %v725
    %v740 = vmul.f32 %v691, %v729
    %v741 = vmul.f32 %v697, %v733
    %743 = vset.pattern.permute.xlu0 4
    %744 = vperm.xlu0 %743, %v598
    %v745 = vpop.permute.xlu0 %744
    %748 = vset.pattern.permute.xlu0 4
    %749 = vperm.xlu0 %748, %v599
    %v750 = vpop.permute.xlu0 %749
    %v752 = vmul.f32 %v588, %v745
    %v753 = vmul.f32 %v589, %v745
    %v754 = vmul.f32 %v590, %v745
    %v755 = vmul.f32 %v591, %v745
    %v756 = vmul.f32 %v592, %v750
    %v757 = vmul.f32 %v593, %v750
    %v758 = vmul.f32 %v594, %v750
    %v759 = vmul.f32 %v595, %v750
    %760 = vrot.lane.b32.xlu0 %v665, 1
    %v761 = vpop.permute.xlu0 %760
    %762 = vrot.lane.b32.xlu0 %v669, 1
    %v763 = vpop.permute.xlu0 %762
    %764 = vrot.lane.b32.xlu0 %v666, 1
    %v765 = vpop.permute.xlu0 %764
    %766 = vrot.lane.b32.xlu0 %v670, 1
    %v767 = vpop.permute.xlu0 %766
    %768 = vrot.lane.b32.xlu0 %v667, 1
    %v769 = vpop.permute.xlu0 %768
    %770 = vrot.lane.b32.xlu0 %v671, 1
    %v771 = vpop.permute.xlu0 %770
    %772 = vrot.lane.b32.xlu0 %v668, 1
    %v773 = vpop.permute.xlu0 %772
    %774 = vrot.lane.b32.xlu0 %v672, 1
    %v775 = vpop.permute.xlu0 %774
    %vm776 = vcmp.lt.s32.totalorder %v617, 1
    %v777 = vsel %vm776, %v769, %v773
    %v778 = vsel %vm776, %v771, %v775
    %v779 = vsel %vm776, %v765, %v769
    %v780 = vsel %vm776, %v767, %v771
    %v781 = vsel %vm776, %v761, %v765
    %v782 = vsel %vm776, %v763, %v767
    %v783 = vsel %vm776, %v773, %v761
    %v784 = vsel %vm776, %v775, %v763
    %v785 = vlaneseq
    %v786 = vshrl.u32 %v785, 7
    %v787 = vsub.s32 2, %v786
    %v788 = vrot.slane %v596, %v787
    %v789 = vlaneseq
    %v790 = vshrl.u32 %v789, 7
    %v791 = vsub.s32 6, %v790
    %v792 = vrot.slane %v596, %v791
    %v793 = vlaneseq
    %v794 = vshrl.u32 %v793, 7
    %v795 = vsub.s32 2, %v794
    %v796 = vrot.slane %v597, %v795
    %v797 = vlaneseq
    %v798 = vshrl.u32 %v797, 7
    %v799 = vsub.s32 6, %v798
    %v800 = vrot.slane %v597, %v799
    %v805 = vlaneseq
    %v806 = vshrl.u32 %v805, 7
    %v807 = vsub.s32 2, %v806
    %v808 = vrot.slane %v788, %v807
    %v809 = vlaneseq
    %v810 = vshrl.u32 %v809, 7
    %v811 = vsub.s32 2, %v810
    %v812 = vrot.slane %v792, %v811
    %v813 = vlaneseq
    %v814 = vshrl.u32 %v813, 7
    %v815 = vsub.s32 2, %v814
    %v816 = vrot.slane %v796, %v815
    %v817 = vlaneseq
    %v818 = vshrl.u32 %v817, 7
    %v819 = vsub.s32 2, %v818
    %v820 = vrot.slane %v800, %v819
    %v821 = vmul.f32 %v783, %v808
    %v822 = vmul.f32 %v781, %v812
    %v823 = vmul.f32 %v779, %v816
    %v824 = vmul.f32 %v777, %v820
    %v825 = vmul.f32 %v784, %v808
    %v826 = vmul.f32 %v782, %v812
    %v827 = vmul.f32 %v780, %v816
    %v828 = vmul.f32 %v778, %v820
    %829 = vset.pattern.permute.xlu0 0
    %830 = vperm.xlu0 %829, %v598
    %v831 = vpop.permute.xlu0 %830
    %833 = vset.pattern.permute.xlu0 0
    %834 = vperm.xlu0 %833, %v599
    %v835 = vpop.permute.xlu0 %834
    %v837 = vmul.f32 %v821, %v831
    %v838 = vmul.f32 %v822, %v831
    %v839 = vmul.f32 %v823, %v831
    %v840 = vmul.f32 %v824, %v831
    %v841 = vmul.f32 %v825, %v835
    %v842 = vmul.f32 %v826, %v835
    %v843 = vmul.f32 %v827, %v835
    %v844 = vmul.f32 %v828, %v835
    %v845 = vadd.f32 %v752, %v837
    %v846 = vadd.f32 %v753, %v838
    %v847 = vadd.f32 %v754, %v839
    %v848 = vadd.f32 %v755, %v840
    %v849 = vadd.f32 %v756, %v841
    %v850 = vadd.f32 %v757, %v842
    %v851 = vadd.f32 %v758, %v843
    %v852 = vadd.f32 %v759, %v844
    %853 = vset.pattern.permute.xlu0 1
    %854 = vperm.xlu0 %853, %v598
    %v855 = vpop.permute.xlu0 %854
    %857 = vset.pattern.permute.xlu0 1
    %858 = vperm.xlu0 %857, %v599
    %v859 = vpop.permute.xlu0 %858
    %v861 = vmul.f32 %v665, %v855
    %v862 = vmul.f32 %v666, %v855
    %v863 = vmul.f32 %v667, %v855
    %v864 = vmul.f32 %v668, %v855
    %v865 = vmul.f32 %v669, %v859
    %v866 = vmul.f32 %v670, %v859
    %v867 = vmul.f32 %v671, %v859
    %v868 = vmul.f32 %v672, %v859
    %v869 = vadd.f32 %v845, %v861
    %v870 = vadd.f32 %v846, %v862
    %v871 = vadd.f32 %v847, %v863
    %v872 = vadd.f32 %v848, %v864
    %v873 = vadd.f32 %v849, %v865
    %v874 = vadd.f32 %v850, %v866
    %v875 = vadd.f32 %v851, %v867
    %v876 = vadd.f32 %v852, %v868
    %877 = vrot.lane.b32.xlu0 %v665, 127
    %v878 = vpop.permute.xlu0 %877
    %879 = vrot.lane.b32.xlu0 %v669, 127
    %v880 = vpop.permute.xlu0 %879
    %881 = vrot.lane.b32.xlu0 %v666, 127
    %v882 = vpop.permute.xlu0 %881
    %883 = vrot.lane.b32.xlu0 %v670, 127
    %v884 = vpop.permute.xlu0 %883
    %885 = vrot.lane.b32.xlu0 %v667, 127
    %v886 = vpop.permute.xlu0 %885
    %887 = vrot.lane.b32.xlu0 %v671, 127
    %v888 = vpop.permute.xlu0 %887
    %889 = vrot.lane.b32.xlu0 %v668, 127
    %v890 = vpop.permute.xlu0 %889
    %891 = vrot.lane.b32.xlu0 %v672, 127
    %v892 = vpop.permute.xlu0 %891
    %vm893 = vcmp.lt.s32.totalorder %v617, 127
    %v894 = vsel %vm893, %v886, %v890
    %v895 = vsel %vm893, %v888, %v892
    %v896 = vsel %vm893, %v882, %v886
    %v897 = vsel %vm893, %v884, %v888
    %v898 = vsel %vm893, %v878, %v882
    %v899 = vsel %vm893, %v880, %v884
    %v900 = vsel %vm893, %v890, %v878
    %v901 = vsel %vm893, %v892, %v880
    %v902 = vlaneseq
    %v903 = vshrl.u32 %v902, 7
    %v904 = vsub.s32 3, %v903
    %v905 = vrot.slane %v596, %v904
    %v906 = vlaneseq
    %v907 = vshrl.u32 %v906, 7
    %v908 = vsub.s32 7, %v907
    %v909 = vrot.slane %v596, %v908
    %v910 = vlaneseq
    %v911 = vshrl.u32 %v910, 7
    %v912 = vsub.s32 3, %v911
    %v913 = vrot.slane %v597, %v912
    %v914 = vlaneseq
    %v915 = vshrl.u32 %v914, 7
    %v916 = vsub.s32 7, %v915
    %v917 = vrot.slane %v597, %v916
    %v922 = vlaneseq
    %v923 = vshrl.u32 %v922, 7
    %v924 = vsub.s32 3, %v923
    %v925 = vrot.slane %v905, %v924
    %v926 = vlaneseq
    %v927 = vshrl.u32 %v926, 7
    %v928 = vsub.s32 3, %v927
    %v929 = vrot.slane %v909, %v928
    %v930 = vlaneseq
    %v931 = vshrl.u32 %v930, 7
    %v932 = vsub.s32 3, %v931
    %v933 = vrot.slane %v913, %v932
    %v934 = vlaneseq
    %v935 = vshrl.u32 %v934, 7
    %v936 = vsub.s32 3, %v935
    %v937 = vrot.slane %v917, %v936
    %v938 = vmul.f32 %v898, %v925
    %v939 = vmul.f32 %v896, %v929
    %v940 = vmul.f32 %v894, %v933
    %v941 = vmul.f32 %v900, %v937
    %v942 = vmul.f32 %v899, %v925
    %v943 = vmul.f32 %v897, %v929
    %v944 = vmul.f32 %v895, %v933
    %v945 = vmul.f32 %v901, %v937
    %946 = vset.pattern.permute.xlu0 2
    %947 = vperm.xlu0 %946, %v598
    %v948 = vpop.permute.xlu0 %947
    %950 = vset.pattern.permute.xlu0 2
    %951 = vperm.xlu0 %950, %v599
    %v952 = vpop.permute.xlu0 %951
    %v954 = vmul.f32 %v938, %v948
    %v955 = vmul.f32 %v939, %v948
    %v956 = vmul.f32 %v940, %v948
    %v957 = vmul.f32 %v941, %v948
    %v958 = vmul.f32 %v942, %v952
    %v959 = vmul.f32 %v943, %v952
    %v960 = vmul.f32 %v944, %v952
    %v961 = vmul.f32 %v945, %v952
    %v962 = vadd.f32 %v869, %v954
    %v963 = vadd.f32 %v870, %v955
    %v964 = vadd.f32 %v871, %v956
    %v965 = vadd.f32 %v872, %v957
    %v966 = vadd.f32 %v873, %v958
    %v967 = vadd.f32 %v874, %v959
    %v968 = vadd.f32 %v875, %v960
    %v969 = vadd.f32 %v876, %v961
    %970 = vrot.lane.b32.xlu0 %v588, 1
    %v971 = vpop.permute.xlu0 %970
    %972 = vrot.lane.b32.xlu0 %v592, 1
    %v973 = vpop.permute.xlu0 %972
    %974 = vrot.lane.b32.xlu0 %v589, 1
    %v975 = vpop.permute.xlu0 %974
    %976 = vrot.lane.b32.xlu0 %v593, 1
    %v977 = vpop.permute.xlu0 %976
    %978 = vrot.lane.b32.xlu0 %v590, 1
    %v979 = vpop.permute.xlu0 %978
    %980 = vrot.lane.b32.xlu0 %v594, 1
    %v981 = vpop.permute.xlu0 %980
    %982 = vrot.lane.b32.xlu0 %v591, 1
    %v983 = vpop.permute.xlu0 %982
    %984 = vrot.lane.b32.xlu0 %v595, 1
    %v985 = vpop.permute.xlu0 %984
    %v986 = vsel %vm776, %v979, %v983
    %v987 = vsel %vm776, %v981, %v985
    %v988 = vsel %vm776, %v975, %v979
    %v989 = vsel %vm776, %v977, %v981
    %v990 = vsel %vm776, %v971, %v975
    %v991 = vsel %vm776, %v973, %v977
    %v992 = vsel %vm776, %v983, %v971
    %v993 = vsel %vm776, %v985, %v973
    %v994 = vmul.f32 %v992, %v808
    %v995 = vmul.f32 %v990, %v812
    %v996 = vmul.f32 %v988, %v816
    %v997 = vmul.f32 %v986, %v820
    %v998 = vmul.f32 %v993, %v808
    %v999 = vmul.f32 %v991, %v812
    %v1000 = vmul.f32 %v989, %v816
    %v1001 = vmul.f32 %v987, %v820
    %1002 = vset.pattern.permute.xlu0 3
    %1003 = vperm.xlu0 %1002, %v598
    %v1004 = vpop.permute.xlu0 %1003
    %1006 = vset.pattern.permute.xlu0 3
    %1007 = vperm.xlu0 %1006, %v599
    %v1008 = vpop.permute.xlu0 %1007
    %v1010 = vmul.f32 %v994, %v1004
    %v1011 = vmul.f32 %v995, %v1004
    %v1012 = vmul.f32 %v996, %v1004
    %v1013 = vmul.f32 %v997, %v1004
    %v1014 = vmul.f32 %v998, %v1008
    %v1015 = vmul.f32 %v999, %v1008
    %v1016 = vmul.f32 %v1000, %v1008
    %v1017 = vmul.f32 %v1001, %v1008
    %v1018 = vadd.f32 %v962, %v1010
    %v1019 = vadd.f32 %v963, %v1011
    %v1020 = vadd.f32 %v964, %v1012
    %v1021 = vadd.f32 %v965, %v1013
    %v1022 = vadd.f32 %v966, %v1014
    %v1023 = vadd.f32 %v967, %v1015
    %v1024 = vadd.f32 %v968, %v1016
    %v1025 = vadd.f32 %v969, %v1017
    %1026 = vrot.lane.b32.xlu0 %v588, 127
    %v1027 = vpop.permute.xlu0 %1026
    %1028 = vrot.lane.b32.xlu0 %v592, 127
    %v1029 = vpop.permute.xlu0 %1028
    %1030 = vrot.lane.b32.xlu0 %v589, 127
    %v1031 = vpop.permute.xlu0 %1030
    %1032 = vrot.lane.b32.xlu0 %v593, 127
    %v1033 = vpop.permute.xlu0 %1032
    %1034 = vrot.lane.b32.xlu0 %v590, 127
    %v1035 = vpop.permute.xlu0 %1034
    %1036 = vrot.lane.b32.xlu0 %v594, 127
    %v1037 = vpop.permute.xlu0 %1036
    %1038 = vrot.lane.b32.xlu0 %v591, 127
    %v1039 = vpop.permute.xlu0 %1038
    %1040 = vrot.lane.b32.xlu0 %v595, 127
    %v1041 = vpop.permute.xlu0 %1040
    %v1042 = vsel %vm893, %v1035, %v1039
    %v1043 = vsel %vm893, %v1037, %v1041
    %v1044 = vsel %vm893, %v1031, %v1035
    %v1045 = vsel %vm893, %v1033, %v1037
    %v1046 = vsel %vm893, %v1027, %v1031
    %v1047 = vsel %vm893, %v1029, %v1033
    %v1048 = vsel %vm893, %v1039, %v1027
    %v1049 = vsel %vm893, %v1041, %v1029
    %v1050 = vmul.f32 %v1046, %v925
    %v1051 = vmul.f32 %v1044, %v929
    %v1052 = vmul.f32 %v1042, %v933
    %v1053 = vmul.f32 %v1048, %v937
    %v1054 = vmul.f32 %v1047, %v925
    %v1055 = vmul.f32 %v1045, %v929
    %v1056 = vmul.f32 %v1043, %v933
    %v1057 = vmul.f32 %v1049, %v937
    %1058 = vset.pattern.permute.xlu0 5
    %1059 = vperm.xlu0 %1058, %v598
    %v1060 = vpop.permute.xlu0 %1059
    %1062 = vset.pattern.permute.xlu0 5
    %1063 = vperm.xlu0 %1062, %v599
    %v1064 = vpop.permute.xlu0 %1063
    %v1066 = vmul.f32 %v1050, %v1060
    %v1067 = vmul.f32 %v1051, %v1060
    %v1068 = vmul.f32 %v1052, %v1060
    %v1069 = vmul.f32 %v1053, %v1060
    %v1070 = vmul.f32 %v1054, %v1064
    %v1071 = vmul.f32 %v1055, %v1064
    %v1072 = vmul.f32 %v1056, %v1064
    %v1073 = vmul.f32 %v1057, %v1064
    %v1074 = vadd.f32 %v1018, %v1066
    %v1075 = vadd.f32 %v1019, %v1067
    %v1076 = vadd.f32 %v1020, %v1068
    %v1077 = vadd.f32 %v1021, %v1069
    %v1078 = vadd.f32 %v1022, %v1070
    %v1079 = vadd.f32 %v1023, %v1071
    %v1080 = vadd.f32 %v1024, %v1072
    %v1081 = vadd.f32 %v1025, %v1073
    %1082 = vrot.lane.b32.xlu0 %v734, 1
    %v1083 = vpop.permute.xlu0 %1082
    %1084 = vrot.lane.b32.xlu0 %v738, 1
    %v1085 = vpop.permute.xlu0 %1084
    %1086 = vrot.lane.b32.xlu0 %v735, 1
    %v1087 = vpop.permute.xlu0 %1086
    %1088 = vrot.lane.b32.xlu0 %v739, 1
    %v1089 = vpop.permute.xlu0 %1088
    %1090 = vrot.lane.b32.xlu0 %v736, 1
    %v1091 = vpop.permute.xlu0 %1090
    %1092 = vrot.lane.b32.xlu0 %v740, 1
    %v1093 = vpop.permute.xlu0 %1092
    %1094 = vrot.lane.b32.xlu0 %v737, 1
    %v1095 = vpop.permute.xlu0 %1094
    %1096 = vrot.lane.b32.xlu0 %v741, 1
    %v1097 = vpop.permute.xlu0 %1096
    %v1098 = vsel %vm776, %v1091, %v1095
    %v1099 = vsel %vm776, %v1093, %v1097
    %v1100 = vsel %vm776, %v1087, %v1091
    %v1101 = vsel %vm776, %v1089, %v1093
    %v1102 = vsel %vm776, %v1083, %v1087
    %v1103 = vsel %vm776, %v1085, %v1089
    %v1104 = vsel %vm776, %v1095, %v1083
    %v1105 = vsel %vm776, %v1097, %v1085
    %v1106 = vmul.f32 %v1104, %v808
    %v1107 = vmul.f32 %v1102, %v812
    %v1108 = vmul.f32 %v1100, %v816
    %v1109 = vmul.f32 %v1098, %v820
    %v1110 = vmul.f32 %v1105, %v808
    %v1111 = vmul.f32 %v1103, %v812
    %v1112 = vmul.f32 %v1101, %v816
    %v1113 = vmul.f32 %v1099, %v820
    %1114 = vset.pattern.permute.xlu0 6
    %1115 = vperm.xlu0 %1114, %v598
    %v1116 = vpop.permute.xlu0 %1115
    %1118 = vset.pattern.permute.xlu0 6
    %1119 = vperm.xlu0 %1118, %v599
    %v1120 = vpop.permute.xlu0 %1119
    %v1122 = vmul.f32 %v1106, %v1116
    %v1123 = vmul.f32 %v1107, %v1116
    %v1124 = vmul.f32 %v1108, %v1116
    %v1125 = vmul.f32 %v1109, %v1116
    %v1126 = vmul.f32 %v1110, %v1120
    %v1127 = vmul.f32 %v1111, %v1120
    %v1128 = vmul.f32 %v1112, %v1120
    %v1129 = vmul.f32 %v1113, %v1120
    %v1130 = vadd.f32 %v1074, %v1122
    %v1131 = vadd.f32 %v1075, %v1123
    %v1132 = vadd.f32 %v1076, %v1124
    %v1133 = vadd.f32 %v1077, %v1125
    %v1134 = vadd.f32 %v1078, %v1126
    %v1135 = vadd.f32 %v1079, %v1127
    %v1136 = vadd.f32 %v1080, %v1128
    %v1137 = vadd.f32 %v1081, %v1129
    %1138 = vset.pattern.permute.xlu0 7
    %1139 = vperm.xlu0 %1138, %v598
    %v1140 = vpop.permute.xlu0 %1139
    %1142 = vset.pattern.permute.xlu0 7
    %1143 = vperm.xlu0 %1142, %v599
    %v1144 = vpop.permute.xlu0 %1143
    %v1146 = vmul.f32 %v734, %v1140
    %v1147 = vmul.f32 %v735, %v1140
    %v1148 = vmul.f32 %v736, %v1140
    %v1149 = vmul.f32 %v737, %v1140
    %v1150 = vmul.f32 %v738, %v1144
    %v1151 = vmul.f32 %v739, %v1144
    %v1152 = vmul.f32 %v740, %v1144
    %v1153 = vmul.f32 %v741, %v1144
    %v1154 = vadd.f32 %v1130, %v1146
    %v1155 = vadd.f32 %v1131, %v1147
    %v1156 = vadd.f32 %v1132, %v1148
    %v1157 = vadd.f32 %v1133, %v1149
    %v1158 = vadd.f32 %v1134, %v1150
    %v1159 = vadd.f32 %v1135, %v1151
    %v1160 = vadd.f32 %v1136, %v1152
    %v1161 = vadd.f32 %v1137, %v1153
    %1162 = vrot.lane.b32.xlu0 %v734, 127
    %v1163 = vpop.permute.xlu0 %1162
    %1164 = vrot.lane.b32.xlu0 %v738, 127
    %v1165 = vpop.permute.xlu0 %1164
    %1166 = vrot.lane.b32.xlu0 %v735, 127
    %v1167 = vpop.permute.xlu0 %1166
    %1168 = vrot.lane.b32.xlu0 %v739, 127
    %v1169 = vpop.permute.xlu0 %1168
    %1170 = vrot.lane.b32.xlu0 %v736, 127
    %v1171 = vpop.permute.xlu0 %1170
    %1172 = vrot.lane.b32.xlu0 %v740, 127
    %v1173 = vpop.permute.xlu0 %1172
    %1174 = vrot.lane.b32.xlu0 %v737, 127
    %v1175 = vpop.permute.xlu0 %1174
    %1176 = vrot.lane.b32.xlu0 %v741, 127
    %v1177 = vpop.permute.xlu0 %1176
    %v1178 = vsel %vm893, %v1171, %v1175
    %v1179 = vsel %vm893, %v1173, %v1177
    %v1180 = vsel %vm893, %v1167, %v1171
    %v1181 = vsel %vm893, %v1169, %v1173
    %v1182 = vsel %vm893, %v1163, %v1167
    %v1183 = vsel %vm893, %v1165, %v1169
    %v1184 = vsel %vm893, %v1175, %v1163
    %v1185 = vsel %vm893, %v1177, %v1165
    %v1186 = vmul.f32 %v1182, %v925
    %v1187 = vmul.f32 %v1180, %v929
    %v1188 = vmul.f32 %v1178, %v933
    %v1189 = vmul.f32 %v1184, %v937
    %v1190 = vmul.f32 %v1183, %v925
    %v1191 = vmul.f32 %v1181, %v929
    %v1192 = vmul.f32 %v1179, %v933
    %v1193 = vmul.f32 %v1185, %v937
    %1194 = vset.pattern.permute.xlu0 8
    %1195 = vperm.xlu0 %1194, %v598
    %v1196 = vpop.permute.xlu0 %1195
    %1198 = vset.pattern.permute.xlu0 8
    %1199 = vperm.xlu0 %1198, %v599
    %v1200 = vpop.permute.xlu0 %1199
    %v1202 = vmul.f32 %v1186, %v1196
    %v1203 = vmul.f32 %v1187, %v1196
    %v1204 = vmul.f32 %v1188, %v1196
    %v1205 = vmul.f32 %v1189, %v1196
    %v1206 = vmul.f32 %v1190, %v1200
    %v1207 = vmul.f32 %v1191, %v1200
    %v1208 = vmul.f32 %v1192, %v1200
    %v1209 = vmul.f32 %v1193, %v1200
    %v1210 = vadd.f32 %v1154, %v1202
    %v1211 = vadd.f32 %v1155, %v1203
    %v1212 = vadd.f32 %v1156, %v1204
    %v1213 = vadd.f32 %v1157, %v1205
    %v1214 = vadd.f32 %v1158, %v1206
    %v1215 = vadd.f32 %v1159, %v1207
    %v1216 = vadd.f32 %v1160, %v1208
    %v1217 = vadd.f32 %v1161, %v1209
    %v1218 = vld [vmem:[%s5] sm:$0xff]
    %v1219 = vld [vmem:[%s5 + $0x8] sm:$0xff]
    %v1220 = vld [vmem:[%s6] sm:$0xff]
    %v1221 = vld [vmem:[%s6 + $0x8] sm:$0xff]
    %1222 = vmatprep.subr.mxu0 0.0
    %1223 = vmatpush1.msra.mxu0 1.0
    %1224 = vmatprep.subr.mxu0 0.0
    %1225 = vmatpush1.msra.mxu0 1.0
    %1226 = vmatprep.subr.mxu0 0.0
    %1227 = vmatpush1.msra.mxu0 1.0
    %1228 = vmatprep.subr.mxu0 0.0
    %1229 = vmatpush1.msra.mxu0 1.0
    %1230 = vmatprep.subr.mxu0 0.0
    %1231 = vmatpush1.msra.mxu0 1.0
    %1232 = vmatprep.subr.mxu0 0.0
    %1233 = vmatpush1.msra.mxu0 1.0
    %1234 = vmatprep.subr.mxu0 0.0
    %1235 = vmatpush1.msra.mxu0 1.0
    %1236 = vmatprep.subr.mxu0 0.0
    %1237 = vmatpush1.msra.mxu0 1.0
    %1238 = vmatprep.subr.mxu0 0.0
    %1239 = vmatpush1.msra.mxu0 1.0
    %1240 = vmatprep.subr.mxu0 0.0
    %1241 = vmatpush1.msra.mxu0 1.0
    %1242 = vmatprep.subr.mxu0 0.0
    %1243 = vmatpush1.msra.mxu0 1.0
    %1244 = vmatprep.subr.mxu0 0.0
    %1245 = vmatpush1.msra.mxu0 1.0
    %1246 = vmatprep.subr.mxu0 0.0
    %1247 = vmatpush1.msra.mxu0 1.0
    %1248 = vmatprep.subr.mxu0 0.0
    %1249 = vmatpush1.msra.mxu0 1.0
    %1250 = vmatprep.subr.mxu0 0.0
    %1251 = vmatpush1.msra.mxu0 1.0
    %1252 = vmatprep.subr.mxu0 0.0
    %1253 = vmatpush1.msra.mxu0 1.0
    %1254 = vmatprep.subr.mxu0 0.0
    %1255 = vmatpush2.msra.mxu0 1.0
    %1256 = vmatprep.subr.mxu0 0.0
    %1257 = vmatpush2.msra.mxu0 1.0
    %1258 = vmatprep.subr.mxu0 0.0
    %1259 = vmatpush2.msra.mxu0 1.0
    %1260 = vmatprep.subr.mxu0 0.0
    %1261 = vmatpush2.msra.mxu0 1.0
    %1262 = vmatprep.subr.mxu0 0.0
    %1263 = vmatpush2.msra.mxu0 1.0
    %1264 = vmatprep.subr.mxu0 0.0
    %1265 = vmatpush2.msra.mxu0 1.0
    %1266 = vmatprep.subr.mxu0 0.0
    %1267 = vmatpush2.msra.mxu0 1.0
    %1268 = vmatprep.subr.mxu0 0.0
    %1269 = vmatpush2.msra.mxu0 1.0
    %1270 = vmatprep.subr.mxu0 0.0
    %1271 = vmatpush2.msra.mxu0 1.0
    %1272 = vmatprep.subr.mxu0 0.0
    %1273 = vmatpush2.msra.mxu0 1.0
    %1274 = vmatprep.subr.mxu0 0.0
    %1275 = vmatpush2.msra.mxu0 1.0
    %1276 = vmatprep.subr.mxu0 0.0
    %1277 = vmatpush2.msra.mxu0 1.0
    %1278 = vmatprep.subr.mxu0 0.0
    %1279 = vmatpush2.msra.mxu0 1.0
    %1280 = vmatprep.subr.mxu0 0.0
    %1281 = vmatpush2.msra.mxu0 1.0
    %1282 = vmatprep.subr.mxu0 0.0
    %1283 = vmatpush2.msra.mxu0 1.0
    %1284 = vmatprep.subr.mxu0 0.0
    %1285 = vmatpush2.msra.mxu0 1.0
    %1286 = vmatprep.mubr.f32.mxu0 %v1211
    %1287 = vmatmul.mubr.f32.gmra.mxu0 %v1210
    %v1288 = vpop.f32.mrf.mxu0
    %v1289 = vadd.f32 0.0, %v1288
    %v1290 = vpop.f32.mrf.mxu0
    %1291 = vmatprep.mubr.f32.mxu0 %v1215
    %1292 = vmatmul.mubr.f32.gmra.mxu0 %v1214
    %v1293 = vpop.f32.mrf.mxu0
    %v1294 = vadd.f32 0.0, %v1293
    %v1295 = vpop.f32.mrf.mxu0
    %1296 = vdwg.mxu0
    %1297 = vmatprep.subr.mxu0 0.0
    %1298 = vmatpush1.msra.mxu0 1.0
    %1299 = vmatprep.subr.mxu0 0.0
    %1300 = vmatpush1.msra.mxu0 1.0
    %1301 = vmatprep.subr.mxu0 0.0
    %1302 = vmatpush1.msra.mxu0 1.0
    %1303 = vmatprep.subr.mxu0 0.0
    %1304 = vmatpush1.msra.mxu0 1.0
    %1305 = vmatprep.subr.mxu0 0.0
    %1306 = vmatpush1.msra.mxu0 1.0
    %1307 = vmatprep.subr.mxu0 0.0
    %1308 = vmatpush1.msra.mxu0 1.0
    %1309 = vmatprep.subr.mxu0 0.0
    %1310 = vmatpush1.msra.mxu0 1.0
    %1311 = vmatprep.subr.mxu0 0.0
    %1312 = vmatpush1.msra.mxu0 1.0
    %1313 = vmatprep.subr.mxu0 0.0
    %1314 = vmatpush1.msra.mxu0 1.0
    %1315 = vmatprep.subr.mxu0 0.0
    %1316 = vmatpush1.msra.mxu0 1.0
    %1317 = vmatprep.subr.mxu0 0.0
    %1318 = vmatpush1.msra.mxu0 1.0
    %1319 = vmatprep.subr.mxu0 0.0
    %1320 = vmatpush1.msra.mxu0 1.0
    %1321 = vmatprep.subr.mxu0 0.0
    %1322 = vmatpush1.msra.mxu0 1.0
    %1323 = vmatprep.subr.mxu0 0.0
    %1324 = vmatpush1.msra.mxu0 1.0
    %1325 = vmatprep.subr.mxu0 0.0
    %1326 = vmatpush1.msra.mxu0 1.0
    %1327 = vmatprep.subr.mxu0 0.0
    %1328 = vmatpush1.msra.mxu0 1.0
    %1329 = vmatprep.subr.mxu0 0.0
    %1330 = vmatpush2.msra.mxu0 1.0
    %1331 = vmatprep.subr.mxu0 0.0
    %1332 = vmatpush2.msra.mxu0 1.0
    %1333 = vmatprep.subr.mxu0 0.0
    %1334 = vmatpush2.msra.mxu0 1.0
    %1335 = vmatprep.subr.mxu0 0.0
    %1336 = vmatpush2.msra.mxu0 1.0
    %1337 = vmatprep.subr.mxu0 0.0
    %1338 = vmatpush2.msra.mxu0 1.0
    %1339 = vmatprep.subr.mxu0 0.0
    %1340 = vmatpush2.msra.mxu0 1.0
    %1341 = vmatprep.subr.mxu0 0.0
    %1342 = vmatpush2.msra.mxu0 1.0
    %1343 = vmatprep.subr.mxu0 0.0
    %1344 = vmatpush2.msra.mxu0 1.0
    %1345 = vmatprep.subr.mxu0 0.0
    %1346 = vmatpush2.msra.mxu0 1.0
    %1347 = vmatprep.subr.mxu0 0.0
    %1348 = vmatpush2.msra.mxu0 1.0
    %1349 = vmatprep.subr.mxu0 0.0
    %1350 = vmatpush2.msra.mxu0 1.0
    %1351 = vmatprep.subr.mxu0 0.0
    %1352 = vmatpush2.msra.mxu0 1.0
    %1353 = vmatprep.subr.mxu0 0.0
    %1354 = vmatpush2.msra.mxu0 1.0
    %1355 = vmatprep.subr.mxu0 0.0
    %1356 = vmatpush2.msra.mxu0 1.0
    %1357 = vmatprep.subr.mxu0 0.0
    %1358 = vmatpush2.msra.mxu0 1.0
    %1359 = vmatprep.subr.mxu0 0.0
    %1360 = vmatpush2.msra.mxu0 1.0
    %1361 = vmatprep.mubr.f32.mxu0 %v1213
    %1362 = vmatmul.mubr.f32.gmra.mxu0 %v1212
    %v1363 = vpop.f32.mrf.mxu0
    %v1364 = vadd.f32 %v1289, %v1363
    %v1365 = vpop.f32.mrf.mxu0
    %1366 = vmatprep.mubr.f32.mxu0 %v1217
    %1367 = vmatmul.mubr.f32.gmra.mxu0 %v1216
    %v1368 = vpop.f32.mrf.mxu0
    %v1369 = vadd.f32 %v1294, %v1368
    %v1370 = vpop.f32.mrf.mxu0
    %1371 = vdwg.mxu0
    %v1372 = vmul.f32 %v1210, %v1210
    %v1373 = vmul.f32 %v1211, %v1211
    %v1374 = vmul.f32 %v1212, %v1212
    %v1375 = vmul.f32 %v1213, %v1213
    %v1376 = vmul.f32 %v1214, %v1214
    %v1377 = vmul.f32 %v1215, %v1215
    %v1378 = vmul.f32 %v1216, %v1216
    %v1379 = vmul.f32 %v1217, %v1217
    %1380 = vmatprep.subr.mxu0 0.0
    %1381 = vmatpush1.msra.mxu0 1.0
    %1382 = vmatprep.subr.mxu0 0.0
    %1383 = vmatpush1.msra.mxu0 1.0
    %1384 = vmatprep.subr.mxu0 0.0
    %1385 = vmatpush1.msra.mxu0 1.0
    %1386 = vmatprep.subr.mxu0 0.0
    %1387 = vmatpush1.msra.mxu0 1.0
    %1388 = vmatprep.subr.mxu0 0.0
    %1389 = vmatpush1.msra.mxu0 1.0
    %1390 = vmatprep.subr.mxu0 0.0
    %1391 = vmatpush1.msra.mxu0 1.0
    %1392 = vmatprep.subr.mxu0 0.0
    %1393 = vmatpush1.msra.mxu0 1.0
    %1394 = vmatprep.subr.mxu0 0.0
    %1395 = vmatpush1.msra.mxu0 1.0
    %1396 = vmatprep.subr.mxu0 0.0
    %1397 = vmatpush1.msra.mxu0 1.0
    %1398 = vmatprep.subr.mxu0 0.0
    %1399 = vmatpush1.msra.mxu0 1.0
    %1400 = vmatprep.subr.mxu0 0.0
    %1401 = vmatpush1.msra.mxu0 1.0
    %1402 = vmatprep.subr.mxu0 0.0
    %1403 = vmatpush1.msra.mxu0 1.0
    %1404 = vmatprep.subr.mxu0 0.0
    %1405 = vmatpush1.msra.mxu0 1.0
    %1406 = vmatprep.subr.mxu0 0.0
    %1407 = vmatpush1.msra.mxu0 1.0
    %1408 = vmatprep.subr.mxu0 0.0
    %1409 = vmatpush1.msra.mxu0 1.0
    %1410 = vmatprep.subr.mxu0 0.0
    %1411 = vmatpush1.msra.mxu0 1.0
    %1412 = vmatprep.subr.mxu0 0.0
    %1413 = vmatpush2.msra.mxu0 1.0
    %1414 = vmatprep.subr.mxu0 0.0
    %1415 = vmatpush2.msra.mxu0 1.0
    %1416 = vmatprep.subr.mxu0 0.0
    %1417 = vmatpush2.msra.mxu0 1.0
    %1418 = vmatprep.subr.mxu0 0.0
    %1419 = vmatpush2.msra.mxu0 1.0
    %1420 = vmatprep.subr.mxu0 0.0
    %1421 = vmatpush2.msra.mxu0 1.0
    %1422 = vmatprep.subr.mxu0 0.0
    %1423 = vmatpush2.msra.mxu0 1.0
    %1424 = vmatprep.subr.mxu0 0.0
    %1425 = vmatpush2.msra.mxu0 1.0
    %1426 = vmatprep.subr.mxu0 0.0
    %1427 = vmatpush2.msra.mxu0 1.0
    %1428 = vmatprep.subr.mxu0 0.0
    %1429 = vmatpush2.msra.mxu0 1.0
    %1430 = vmatprep.subr.mxu0 0.0
    %1431 = vmatpush2.msra.mxu0 1.0
    %1432 = vmatprep.subr.mxu0 0.0
    %1433 = vmatpush2.msra.mxu0 1.0
    %1434 = vmatprep.subr.mxu0 0.0
    %1435 = vmatpush2.msra.mxu0 1.0
    %1436 = vmatprep.subr.mxu0 0.0
    %1437 = vmatpush2.msra.mxu0 1.0
    %1438 = vmatprep.subr.mxu0 0.0
    %1439 = vmatpush2.msra.mxu0 1.0
    %1440 = vmatprep.subr.mxu0 0.0
    %1441 = vmatpush2.msra.mxu0 1.0
    %1442 = vmatprep.subr.mxu0 0.0
    %1443 = vmatpush2.msra.mxu0 1.0
    %1444 = vmatprep.mubr.f32.mxu0 %v1373
    %1445 = vmatmul.mubr.f32.gmra.mxu0 %v1372
    %v1446 = vpop.f32.mrf.mxu0
    %v1447 = vadd.f32 0.0, %v1446
    %v1448 = vpop.f32.mrf.mxu0
    %1449 = vmatprep.mubr.f32.mxu0 %v1377
    %1450 = vmatmul.mubr.f32.gmra.mxu0 %v1376
    %v1451 = vpop.f32.mrf.mxu0
    %v1452 = vadd.f32 0.0, %v1451
    %v1453 = vpop.f32.mrf.mxu0
    %1454 = vdwg.mxu0
    %1455 = vmatprep.subr.mxu0 0.0
    %1456 = vmatpush1.msra.mxu0 1.0
    %1457 = vmatprep.subr.mxu0 0.0
    %1458 = vmatpush1.msra.mxu0 1.0
    %1459 = vmatprep.subr.mxu0 0.0
    %1460 = vmatpush1.msra.mxu0 1.0
    %1461 = vmatprep.subr.mxu0 0.0
    %1462 = vmatpush1.msra.mxu0 1.0
    %1463 = vmatprep.subr.mxu0 0.0
    %1464 = vmatpush1.msra.mxu0 1.0
    %1465 = vmatprep.subr.mxu0 0.0
    %1466 = vmatpush1.msra.mxu0 1.0
    %1467 = vmatprep.subr.mxu0 0.0
    %1468 = vmatpush1.msra.mxu0 1.0
    %1469 = vmatprep.subr.mxu0 0.0
    %1470 = vmatpush1.msra.mxu0 1.0
    %1471 = vmatprep.subr.mxu0 0.0
    %1472 = vmatpush1.msra.mxu0 1.0
    %1473 = vmatprep.subr.mxu0 0.0
    %1474 = vmatpush1.msra.mxu0 1.0
    %1475 = vmatprep.subr.mxu0 0.0
    %1476 = vmatpush1.msra.mxu0 1.0
    %1477 = vmatprep.subr.mxu0 0.0
    %1478 = vmatpush1.msra.mxu0 1.0
    %1479 = vmatprep.subr.mxu0 0.0
    %1480 = vmatpush1.msra.mxu0 1.0
    %1481 = vmatprep.subr.mxu0 0.0
    %1482 = vmatpush1.msra.mxu0 1.0
    %1483 = vmatprep.subr.mxu0 0.0
    %1484 = vmatpush1.msra.mxu0 1.0
    %1485 = vmatprep.subr.mxu0 0.0
    %1486 = vmatpush1.msra.mxu0 1.0
    %1487 = vmatprep.subr.mxu0 0.0
    %1488 = vmatpush2.msra.mxu0 1.0
    %1489 = vmatprep.subr.mxu0 0.0
    %1490 = vmatpush2.msra.mxu0 1.0
    %1491 = vmatprep.subr.mxu0 0.0
    %1492 = vmatpush2.msra.mxu0 1.0
    %1493 = vmatprep.subr.mxu0 0.0
    %1494 = vmatpush2.msra.mxu0 1.0
    %1495 = vmatprep.subr.mxu0 0.0
    %1496 = vmatpush2.msra.mxu0 1.0
    %1497 = vmatprep.subr.mxu0 0.0
    %1498 = vmatpush2.msra.mxu0 1.0
    %1499 = vmatprep.subr.mxu0 0.0
    %1500 = vmatpush2.msra.mxu0 1.0
    %1501 = vmatprep.subr.mxu0 0.0
    %1502 = vmatpush2.msra.mxu0 1.0
    %1503 = vmatprep.subr.mxu0 0.0
    %1504 = vmatpush2.msra.mxu0 1.0
    %1505 = vmatprep.subr.mxu0 0.0
    %1506 = vmatpush2.msra.mxu0 1.0
    %1507 = vmatprep.subr.mxu0 0.0
    %1508 = vmatpush2.msra.mxu0 1.0
    %1509 = vmatprep.subr.mxu0 0.0
    %1510 = vmatpush2.msra.mxu0 1.0
    %1511 = vmatprep.subr.mxu0 0.0
    %1512 = vmatpush2.msra.mxu0 1.0
    %1513 = vmatprep.subr.mxu0 0.0
    %1514 = vmatpush2.msra.mxu0 1.0
    %1515 = vmatprep.subr.mxu0 0.0
    %1516 = vmatpush2.msra.mxu0 1.0
    %1517 = vmatprep.subr.mxu0 0.0
    %1518 = vmatpush2.msra.mxu0 1.0
    %1519 = vmatprep.mubr.f32.mxu0 %v1375
    %1520 = vmatmul.mubr.f32.gmra.mxu0 %v1374
    %v1521 = vpop.f32.mrf.mxu0
    %v1522 = vadd.f32 %v1447, %v1521
    %v1523 = vpop.f32.mrf.mxu0
    %1524 = vmatprep.mubr.f32.mxu0 %v1379
    %1525 = vmatmul.mubr.f32.gmra.mxu0 %v1378
    %v1526 = vpop.f32.mrf.mxu0
    %v1527 = vadd.f32 %v1452, %v1526
    %v1528 = vpop.f32.mrf.mxu0
    %1529 = vdwg.mxu0
    %v1530 = vmul.f32 %v1364, 0.001953125
    %v1531 = vmul.f32 %v1369, 0.001953125
    %v1532 = vmul.f32 %v1522, 0.001953125
    %v1533 = vmul.f32 %v1527, 0.001953125
    %v1534 = vmul.f32 %v1530, %v1530
    %v1535 = vmul.f32 %v1531, %v1531
    %v1536 = vsub.f32 %v1532, %v1534
    %v1537 = vsub.f32 %v1533, %v1535
    %v1538 = vadd.f32 %v1536, 1e-05
    %v1539 = vadd.f32 %v1537, 1e-05
    %v1540 = vrsqrt.pop %v1538
    %v1541 = vrsqrt.pop %v1539
    %v1542 = vmul.f32 %v1218, %v1540
    %v1543 = vmul.f32 %v1219, %v1541
    %1545 = vset.pattern.permute.xlu0 0
    %1546 = vperm.xlu0 %1545, %v1542
    %v1547 = vpop.permute.xlu0 %1546
    %1550 = vset.pattern.permute.xlu0 0
    %1551 = vperm.xlu0 %1550, %v1543
    %v1552 = vpop.permute.xlu0 %1551
    %v1554 = vmul.f32 %v1210, %v1547
    %v1555 = vmul.f32 %v1211, %v1547
    %v1556 = vmul.f32 %v1212, %v1547
    %v1557 = vmul.f32 %v1213, %v1547
    %v1558 = vmul.f32 %v1214, %v1552
    %v1559 = vmul.f32 %v1215, %v1552
    %v1560 = vmul.f32 %v1216, %v1552
    %v1561 = vmul.f32 %v1217, %v1552
    %v1562 = vmul.f32 %v1530, %v1542
    %v1563 = vmul.f32 %v1531, %v1543
    %v1564 = vsub.f32 %v1220, %v1562
    %v1565 = vsub.f32 %v1221, %v1563
    %1567 = vset.pattern.permute.xlu0 0
    %1568 = vperm.xlu0 %1567, %v1564
    %v1569 = vpop.permute.xlu0 %1568
    %1572 = vset.pattern.permute.xlu0 0
    %1573 = vperm.xlu0 %1572, %v1565
    %v1574 = vpop.permute.xlu0 %1573
    %v1576 = vadd.f32 %v1554, %v1569
    %v1577 = vadd.f32 %v1555, %v1569
    %v1578 = vadd.f32 %v1556, %v1569
    %v1579 = vadd.f32 %v1557, %v1569
    %v1580 = vadd.f32 %v1558, %v1574
    %v1581 = vadd.f32 %v1559, %v1574
    %v1582 = vadd.f32 %v1560, %v1574
    %v1583 = vadd.f32 %v1561, %v1574
    %v1584 = vld [vmem:[%s7] sm:$0xff]
    %v1585 = vld [vmem:[%s7 + $0x8] sm:$0xff]
    %v1587 = vsel %vm61, %v1584, 0
    %v1590 = vsel %vm61, %v1585, 0
    %1592 = vmatprep.subr.mxu0 0.0
    %1593 = vmatpush1.msra.mxu0 0.0
    %1594 = vmatprep.subr.mxu0 0.0
    %1595 = vmatpush1.msra.mxu0 0.0
    %1596 = vmatprep.subr.mxu0 0.0
    %1597 = vmatpush1.msra.mxu0 0.0
    %1598 = vmatprep.subr.mxu0 0.0
    %1599 = vmatpush1.msra.mxu0 0.0
    %1600 = vmatprep.subr.mxu0 0.0
    %1601 = vmatpush1.msra.mxu0 0.0
    %1602 = vmatprep.subr.mxu0 0.0
    %1603 = vmatpush1.msra.mxu0 0.0
    %1604 = vmatprep.subr.mxu0 0.0
    %1605 = vmatpush1.msra.mxu0 0.0
    %1606 = vmatprep.subr.mxu0 0.0
    %1607 = vmatpush1.msra.mxu0 0.0
    %1608 = vmatprep.subr.mxu0 0.0
    %1609 = vmatpush1.msra.mxu0 0.0
    %1610 = vmatprep.subr.mxu0 0.0
    %1611 = vmatpush1.msra.mxu0 0.0
    %1612 = vmatprep.subr.mxu0 0.0
    %1613 = vmatpush1.msra.mxu0 0.0
    %1614 = vmatprep.subr.mxu0 0.0
    %1615 = vmatpush1.msra.mxu0 0.0
    %1616 = vmatprep.subr.mxu0 0.0
    %1617 = vmatpush1.msra.mxu0 0.0
    %1618 = vmatprep.subr.mxu0 0.0
    %1619 = vmatpush1.msra.mxu0 0.0
    %1620 = vmatprep.subr.mxu0 %v1581
    %1621 = vmatpush1.msra.mxu0 %v1580
    %1622 = vmatprep.subr.mxu0 %v1577
    %1623 = vmatpush1.msra.mxu0 %v1576
    %1624 = vmatprep.subr.mxu0 0.0
    %1625 = vmatpush2.msra.mxu0 0.0
    %1626 = vmatprep.subr.mxu0 0.0
    %1627 = vmatpush2.msra.mxu0 0.0
    %1628 = vmatprep.subr.mxu0 0.0
    %1629 = vmatpush2.msra.mxu0 0.0
    %1630 = vmatprep.subr.mxu0 0.0
    %1631 = vmatpush2.msra.mxu0 0.0
    %1632 = vmatprep.subr.mxu0 0.0
    %1633 = vmatpush2.msra.mxu0 0.0
    %1634 = vmatprep.subr.mxu0 0.0
    %1635 = vmatpush2.msra.mxu0 0.0
    %1636 = vmatprep.subr.mxu0 0.0
    %1637 = vmatpush2.msra.mxu0 0.0
    %1638 = vmatprep.subr.mxu0 0.0
    %1639 = vmatpush2.msra.mxu0 0.0
    %1640 = vmatprep.subr.mxu0 0.0
    %1641 = vmatpush2.msra.mxu0 0.0
    %1642 = vmatprep.subr.mxu0 0.0
    %1643 = vmatpush2.msra.mxu0 0.0
    %1644 = vmatprep.subr.mxu0 0.0
    %1645 = vmatpush2.msra.mxu0 0.0
    %1646 = vmatprep.subr.mxu0 0.0
    %1647 = vmatpush2.msra.mxu0 0.0
    %1648 = vmatprep.subr.mxu0 0.0
    %1649 = vmatpush2.msra.mxu0 0.0
    %1650 = vmatprep.subr.mxu0 0.0
    %1651 = vmatpush2.msra.mxu0 0.0
    %1652 = vmatprep.subr.mxu0 0.0
    %1653 = vmatpush2.msra.mxu0 0.0
    %1654 = vmatprep.subr.mxu0 0.0
    %1655 = vmatpush2.msra.mxu0 0.0
    %1656 = vmatprep.mubr.f32.mxu0 0.0
    %1657 = vmatmul.mubr.f32.gmra.mxu0 %v1587
    %v1658 = vpop.f32.mrf.mxu0
    %v1659 = vadd.f32 0.0, %v1658
    %v1660 = vpop.f32.mrf.mxu0
    %v1661 = vadd.f32 0.0, %v1660
    %1662 = vmatprep.mubr.f32.mxu0 0.0
    %1663 = vmatmul.mubr.f32.gmra.mxu0 %v1590
    %v1664 = vpop.f32.mrf.mxu0
    %v1665 = vadd.f32 0.0, %v1664
    %v1666 = vpop.f32.mrf.mxu0
    %v1667 = vadd.f32 0.0, %v1666
    %1668 = vdwg.mxu0
    %1669 = vmatprep.subr.mxu0 0.0
    %1670 = vmatpush1.msra.mxu0 0.0
    %1671 = vmatprep.subr.mxu0 0.0
    %1672 = vmatpush1.msra.mxu0 0.0
    %1673 = vmatprep.subr.mxu0 0.0
    %1674 = vmatpush1.msra.mxu0 0.0
    %1675 = vmatprep.subr.mxu0 0.0
    %1676 = vmatpush1.msra.mxu0 0.0
    %1677 = vmatprep.subr.mxu0 0.0
    %1678 = vmatpush1.msra.mxu0 0.0
    %1679 = vmatprep.subr.mxu0 0.0
    %1680 = vmatpush1.msra.mxu0 0.0
    %1681 = vmatprep.subr.mxu0 0.0
    %1682 = vmatpush1.msra.mxu0 0.0
    %1683 = vmatprep.subr.mxu0 0.0
    %1684 = vmatpush1.msra.mxu0 0.0
    %1685 = vmatprep.subr.mxu0 0.0
    %1686 = vmatpush1.msra.mxu0 0.0
    %1687 = vmatprep.subr.mxu0 0.0
    %1688 = vmatpush1.msra.mxu0 0.0
    %1689 = vmatprep.subr.mxu0 0.0
    %1690 = vmatpush1.msra.mxu0 0.0
    %1691 = vmatprep.subr.mxu0 0.0
    %1692 = vmatpush1.msra.mxu0 0.0
    %1693 = vmatprep.subr.mxu0 0.0
    %1694 = vmatpush1.msra.mxu0 0.0
    %1695 = vmatprep.subr.mxu0 0.0
    %1696 = vmatpush1.msra.mxu0 0.0
    %1697 = vmatprep.subr.mxu0 %v1583
    %1698 = vmatpush1.msra.mxu0 %v1582
    %1699 = vmatprep.subr.mxu0 %v1579
    %1700 = vmatpush1.msra.mxu0 %v1578
    %1701 = vmatprep.subr.mxu0 0.0
    %1702 = vmatpush2.msra.mxu0 0.0
    %1703 = vmatprep.subr.mxu0 0.0
    %1704 = vmatpush2.msra.mxu0 0.0
    %1705 = vmatprep.subr.mxu0 0.0
    %1706 = vmatpush2.msra.mxu0 0.0
    %1707 = vmatprep.subr.mxu0 0.0
    %1708 = vmatpush2.msra.mxu0 0.0
    %1709 = vmatprep.subr.mxu0 0.0
    %1710 = vmatpush2.msra.mxu0 0.0
    %1711 = vmatprep.subr.mxu0 0.0
    %1712 = vmatpush2.msra.mxu0 0.0
    %1713 = vmatprep.subr.mxu0 0.0
    %1714 = vmatpush2.msra.mxu0 0.0
    %1715 = vmatprep.subr.mxu0 0.0
    %1716 = vmatpush2.msra.mxu0 0.0
    %1717 = vmatprep.subr.mxu0 0.0
    %1718 = vmatpush2.msra.mxu0 0.0
    %1719 = vmatprep.subr.mxu0 0.0
    %1720 = vmatpush2.msra.mxu0 0.0
    %1721 = vmatprep.subr.mxu0 0.0
    %1722 = vmatpush2.msra.mxu0 0.0
    %1723 = vmatprep.subr.mxu0 0.0
    %1724 = vmatpush2.msra.mxu0 0.0
    %1725 = vmatprep.subr.mxu0 0.0
    %1726 = vmatpush2.msra.mxu0 0.0
    %1727 = vmatprep.subr.mxu0 0.0
    %1728 = vmatpush2.msra.mxu0 0.0
    %1729 = vmatprep.subr.mxu0 0.0
    %1730 = vmatpush2.msra.mxu0 0.0
    %1731 = vmatprep.subr.mxu0 0.0
    %1732 = vmatpush2.msra.mxu0 0.0
    %1733 = vmatprep.mubr.f32.mxu0 0.0
    %1734 = vmatmul.mubr.f32.gmra.mxu0 %v1587
    %v1735 = vpop.f32.mrf.mxu0
    %v1736 = vadd.f32 0.0, %v1735
    %v1737 = vpop.f32.mrf.mxu0
    %v1738 = vadd.f32 0.0, %v1737
    %1739 = vmatprep.mubr.f32.mxu0 0.0
    %1740 = vmatmul.mubr.f32.gmra.mxu0 %v1590
    %v1741 = vpop.f32.mrf.mxu0
    %v1742 = vadd.f32 0.0, %v1741
    %v1743 = vpop.f32.mrf.mxu0
    %v1744 = vadd.f32 0.0, %v1743
    %1745 = vdwg.mxu0
    %v1746 = vld [vmem:[%s8] sm:$0xff]
    %v1747 = vld [vmem:[%s8 + $0x8] sm:$0xff]
    %v1748 = vld [vmem:[%s9] sm:$0xff]
    %v1749 = vld [vmem:[%s9 + $0x8] sm:$0xff]
    %1750 = vmatprep.subr.mxu0 0.0
    %1751 = vmatpush1.msra.mxu0 1.0
    %1752 = vmatprep.subr.mxu0 0.0
    %1753 = vmatpush1.msra.mxu0 1.0
    %1754 = vmatprep.subr.mxu0 0.0
    %1755 = vmatpush1.msra.mxu0 1.0
    %1756 = vmatprep.subr.mxu0 0.0
    %1757 = vmatpush1.msra.mxu0 1.0
    %1758 = vmatprep.subr.mxu0 0.0
    %1759 = vmatpush1.msra.mxu0 1.0
    %1760 = vmatprep.subr.mxu0 0.0
    %1761 = vmatpush1.msra.mxu0 1.0
    %1762 = vmatprep.subr.mxu0 0.0
    %1763 = vmatpush1.msra.mxu0 1.0
    %1764 = vmatprep.subr.mxu0 0.0
    %1765 = vmatpush1.msra.mxu0 1.0
    %1766 = vmatprep.subr.mxu0 0.0
    %1767 = vmatpush1.msra.mxu0 1.0
    %1768 = vmatprep.subr.mxu0 0.0
    %1769 = vmatpush1.msra.mxu0 1.0
    %1770 = vmatprep.subr.mxu0 0.0
    %1771 = vmatpush1.msra.mxu0 1.0
    %1772 = vmatprep.subr.mxu0 0.0
    %1773 = vmatpush1.msra.mxu0 1.0
    %1774 = vmatprep.subr.mxu0 0.0
    %1775 = vmatpush1.msra.mxu0 1.0
    %1776 = vmatprep.subr.mxu0 0.0
    %1777 = vmatpush1.msra.mxu0 1.0
    %1778 = vmatprep.subr.mxu0 0.0
    %1779 = vmatpush1.msra.mxu0 1.0
    %1780 = vmatprep.subr.mxu0 0.0
    %1781 = vmatpush1.msra.mxu0 1.0
    %1782 = vmatprep.subr.mxu0 0.0
    %1783 = vmatpush2.msra.mxu0 1.0
    %1784 = vmatprep.subr.mxu0 0.0
    %1785 = vmatpush2.msra.mxu0 1.0
    %1786 = vmatprep.subr.mxu0 0.0
    %1787 = vmatpush2.msra.mxu0 1.0
    %1788 = vmatprep.subr.mxu0 0.0
    %1789 = vmatpush2.msra.mxu0 1.0
    %1790 = vmatprep.subr.mxu0 0.0
    %1791 = vmatpush2.msra.mxu0 1.0
    %1792 = vmatprep.subr.mxu0 0.0
    %1793 = vmatpush2.msra.mxu0 1.0
    %1794 = vmatprep.subr.mxu0 0.0
    %1795 = vmatpush2.msra.mxu0 1.0
    %1796 = vmatprep.subr.mxu0 0.0
    %1797 = vmatpush2.msra.mxu0 1.0
    %1798 = vmatprep.subr.mxu0 0.0
    %1799 = vmatpush2.msra.mxu0 1.0
    %1800 = vmatprep.subr.mxu0 0.0
    %1801 = vmatpush2.msra.mxu0 1.0
    %1802 = vmatprep.subr.mxu0 0.0
    %1803 = vmatpush2.msra.mxu0 1.0
    %1804 = vmatprep.subr.mxu0 0.0
    %1805 = vmatpush2.msra.mxu0 1.0
    %1806 = vmatprep.subr.mxu0 0.0
    %1807 = vmatpush2.msra.mxu0 1.0
    %1808 = vmatprep.subr.mxu0 0.0
    %1809 = vmatpush2.msra.mxu0 1.0
    %1810 = vmatprep.subr.mxu0 0.0
    %1811 = vmatpush2.msra.mxu0 1.0
    %1812 = vmatprep.subr.mxu0 0.0
    %1813 = vmatpush2.msra.mxu0 1.0
    %1814 = vmatprep.mubr.f32.mxu0 %v1661
    %1815 = vmatmul.mubr.f32.gmra.mxu0 %v1659
    %v1816 = vpop.f32.mrf.mxu0
    %v1817 = vadd.f32 0.0, %v1816
    %v1818 = vpop.f32.mrf.mxu0
    %1819 = vmatprep.mubr.f32.mxu0 %v1667
    %1820 = vmatmul.mubr.f32.gmra.mxu0 %v1665
    %v1821 = vpop.f32.mrf.mxu0
    %v1822 = vadd.f32 0.0, %v1821
    %v1823 = vpop.f32.mrf.mxu0
    %1824 = vdwg.mxu0
    %1825 = vmatprep.subr.mxu0 0.0
    %1826 = vmatpush1.msra.mxu0 1.0
    %1827 = vmatprep.subr.mxu0 0.0
    %1828 = vmatpush1.msra.mxu0 1.0
    %1829 = vmatprep.subr.mxu0 0.0
    %1830 = vmatpush1.msra.mxu0 1.0
    %1831 = vmatprep.subr.mxu0 0.0
    %1832 = vmatpush1.msra.mxu0 1.0
    %1833 = vmatprep.subr.mxu0 0.0
    %1834 = vmatpush1.msra.mxu0 1.0
    %1835 = vmatprep.subr.mxu0 0.0
    %1836 = vmatpush1.msra.mxu0 1.0
    %1837 = vmatprep.subr.mxu0 0.0
    %1838 = vmatpush1.msra.mxu0 1.0
    %1839 = vmatprep.subr.mxu0 0.0
    %1840 = vmatpush1.msra.mxu0 1.0
    %1841 = vmatprep.subr.mxu0 0.0
    %1842 = vmatpush1.msra.mxu0 1.0
    %1843 = vmatprep.subr.mxu0 0.0
    %1844 = vmatpush1.msra.mxu0 1.0
    %1845 = vmatprep.subr.mxu0 0.0
    %1846 = vmatpush1.msra.mxu0 1.0
    %1847 = vmatprep.subr.mxu0 0.0
    %1848 = vmatpush1.msra.mxu0 1.0
    %1849 = vmatprep.subr.mxu0 0.0
    %1850 = vmatpush1.msra.mxu0 1.0
    %1851 = vmatprep.subr.mxu0 0.0
    %1852 = vmatpush1.msra.mxu0 1.0
    %1853 = vmatprep.subr.mxu0 0.0
    %1854 = vmatpush1.msra.mxu0 1.0
    %1855 = vmatprep.subr.mxu0 0.0
    %1856 = vmatpush1.msra.mxu0 1.0
    %1857 = vmatprep.subr.mxu0 0.0
    %1858 = vmatpush2.msra.mxu0 1.0
    %1859 = vmatprep.subr.mxu0 0.0
    %1860 = vmatpush2.msra.mxu0 1.0
    %1861 = vmatprep.subr.mxu0 0.0
    %1862 = vmatpush2.msra.mxu0 1.0
    %1863 = vmatprep.subr.mxu0 0.0
    %1864 = vmatpush2.msra.mxu0 1.0
    %1865 = vmatprep.subr.mxu0 0.0
    %1866 = vmatpush2.msra.mxu0 1.0
    %1867 = vmatprep.subr.mxu0 0.0
    %1868 = vmatpush2.msra.mxu0 1.0
    %1869 = vmatprep.subr.mxu0 0.0
    %1870 = vmatpush2.msra.mxu0 1.0
    %1871 = vmatprep.subr.mxu0 0.0
    %1872 = vmatpush2.msra.mxu0 1.0
    %1873 = vmatprep.subr.mxu0 0.0
    %1874 = vmatpush2.msra.mxu0 1.0
    %1875 = vmatprep.subr.mxu0 0.0
    %1876 = vmatpush2.msra.mxu0 1.0
    %1877 = vmatprep.subr.mxu0 0.0
    %1878 = vmatpush2.msra.mxu0 1.0
    %1879 = vmatprep.subr.mxu0 0.0
    %1880 = vmatpush2.msra.mxu0 1.0
    %1881 = vmatprep.subr.mxu0 0.0
    %1882 = vmatpush2.msra.mxu0 1.0
    %1883 = vmatprep.subr.mxu0 0.0
    %1884 = vmatpush2.msra.mxu0 1.0
    %1885 = vmatprep.subr.mxu0 0.0
    %1886 = vmatpush2.msra.mxu0 1.0
    %1887 = vmatprep.subr.mxu0 0.0
    %1888 = vmatpush2.msra.mxu0 1.0
    %1889 = vmatprep.mubr.f32.mxu0 %v1738
    %1890 = vmatmul.mubr.f32.gmra.mxu0 %v1736
    %v1891 = vpop.f32.mrf.mxu0
    %v1892 = vadd.f32 %v1817, %v1891
    %v1893 = vpop.f32.mrf.mxu0
    %1894 = vmatprep.mubr.f32.mxu0 %v1744
    %1895 = vmatmul.mubr.f32.gmra.mxu0 %v1742
    %v1896 = vpop.f32.mrf.mxu0
    %v1897 = vadd.f32 %v1822, %v1896
    %v1898 = vpop.f32.mrf.mxu0
    %1899 = vdwg.mxu0
    %v1900 = vmul.f32 %v1659, %v1659
    %v1901 = vmul.f32 %v1661, %v1661
    %v1902 = vmul.f32 %v1736, %v1736
    %v1903 = vmul.f32 %v1738, %v1738
    %v1904 = vmul.f32 %v1665, %v1665
    %v1905 = vmul.f32 %v1667, %v1667
    %v1906 = vmul.f32 %v1742, %v1742
    %v1907 = vmul.f32 %v1744, %v1744
    %1908 = vmatprep.subr.mxu0 0.0
    %1909 = vmatpush1.msra.mxu0 1.0
    %1910 = vmatprep.subr.mxu0 0.0
    %1911 = vmatpush1.msra.mxu0 1.0
    %1912 = vmatprep.subr.mxu0 0.0
    %1913 = vmatpush1.msra.mxu0 1.0
    %1914 = vmatprep.subr.mxu0 0.0
    %1915 = vmatpush1.msra.mxu0 1.0
    %1916 = vmatprep.subr.mxu0 0.0
    %1917 = vmatpush1.msra.mxu0 1.0
    %1918 = vmatprep.subr.mxu0 0.0
    %1919 = vmatpush1.msra.mxu0 1.0
    %1920 = vmatprep.subr.mxu0 0.0
    %1921 = vmatpush1.msra.mxu0 1.0
    %1922 = vmatprep.subr.mxu0 0.0
    %1923 = vmatpush1.msra.mxu0 1.0
    %1924 = vmatprep.subr.mxu0 0.0
    %1925 = vmatpush1.msra.mxu0 1.0
    %1926 = vmatprep.subr.mxu0 0.0
    %1927 = vmatpush1.msra.mxu0 1.0
    %1928 = vmatprep.subr.mxu0 0.0
    %1929 = vmatpush1.msra.mxu0 1.0
    %1930 = vmatprep.subr.mxu0 0.0
    %1931 = vmatpush1.msra.mxu0 1.0
    %1932 = vmatprep.subr.mxu0 0.0
    %1933 = vmatpush1.msra.mxu0 1.0
    %1934 = vmatprep.subr.mxu0 0.0
    %1935 = vmatpush1.msra.mxu0 1.0
    %1936 = vmatprep.subr.mxu0 0.0
    %1937 = vmatpush1.msra.mxu0 1.0
    %1938 = vmatprep.subr.mxu0 0.0
    %1939 = vmatpush1.msra.mxu0 1.0
    %1940 = vmatprep.subr.mxu0 0.0
    %1941 = vmatpush2.msra.mxu0 1.0
    %1942 = vmatprep.subr.mxu0 0.0
    %1943 = vmatpush2.msra.mxu0 1.0
    %1944 = vmatprep.subr.mxu0 0.0
    %1945 = vmatpush2.msra.mxu0 1.0
    %1946 = vmatprep.subr.mxu0 0.0
    %1947 = vmatpush2.msra.mxu0 1.0
    %1948 = vmatprep.subr.mxu0 0.0
    %1949 = vmatpush2.msra.mxu0 1.0
    %1950 = vmatprep.subr.mxu0 0.0
    %1951 = vmatpush2.msra.mxu0 1.0
    %1952 = vmatprep.subr.mxu0 0.0
    %1953 = vmatpush2.msra.mxu0 1.0
    %1954 = vmatprep.subr.mxu0 0.0
    %1955 = vmatpush2.msra.mxu0 1.0
    %1956 = vmatprep.subr.mxu0 0.0
    %1957 = vmatpush2.msra.mxu0 1.0
    %1958 = vmatprep.subr.mxu0 0.0
    %1959 = vmatpush2.msra.mxu0 1.0
    %1960 = vmatprep.subr.mxu0 0.0
    %1961 = vmatpush2.msra.mxu0 1.0
    %1962 = vmatprep.subr.mxu0 0.0
    %1963 = vmatpush2.msra.mxu0 1.0
    %1964 = vmatprep.subr.mxu0 0.0
    %1965 = vmatpush2.msra.mxu0 1.0
    %1966 = vmatprep.subr.mxu0 0.0
    %1967 = vmatpush2.msra.mxu0 1.0
    %1968 = vmatprep.subr.mxu0 0.0
    %1969 = vmatpush2.msra.mxu0 1.0
    %1970 = vmatprep.subr.mxu0 0.0
    %1971 = vmatpush2.msra.mxu0 1.0
    %1972 = vmatprep.mubr.f32.mxu0 %v1901
    %1973 = vmatmul.mubr.f32.gmra.mxu0 %v1900
    %v1974 = vpop.f32.mrf.mxu0
    %v1975 = vadd.f32 0.0, %v1974
    %v1976 = vpop.f32.mrf.mxu0
    %1977 = vmatprep.mubr.f32.mxu0 %v1905
    %1978 = vmatmul.mubr.f32.gmra.mxu0 %v1904
    %v1979 = vpop.f32.mrf.mxu0
    %v1980 = vadd.f32 0.0, %v1979
    %v1981 = vpop.f32.mrf.mxu0
    %1982 = vdwg.mxu0
    %1983 = vmatprep.subr.mxu0 0.0
    %1984 = vmatpush1.msra.mxu0 1.0
    %1985 = vmatprep.subr.mxu0 0.0
    %1986 = vmatpush1.msra.mxu0 1.0
    %1987 = vmatprep.subr.mxu0 0.0
    %1988 = vmatpush1.msra.mxu0 1.0
    %1989 = vmatprep.subr.mxu0 0.0
    %1990 = vmatpush1.msra.mxu0 1.0
    %1991 = vmatprep.subr.mxu0 0.0
    %1992 = vmatpush1.msra.mxu0 1.0
    %1993 = vmatprep.subr.mxu0 0.0
    %1994 = vmatpush1.msra.mxu0 1.0
    %1995 = vmatprep.subr.mxu0 0.0
    %1996 = vmatpush1.msra.mxu0 1.0
    %1997 = vmatprep.subr.mxu0 0.0
    %1998 = vmatpush1.msra.mxu0 1.0
    %1999 = vmatprep.subr.mxu0 0.0
    %2000 = vmatpush1.msra.mxu0 1.0
    %2001 = vmatprep.subr.mxu0 0.0
    %2002 = vmatpush1.msra.mxu0 1.0
    %2003 = vmatprep.subr.mxu0 0.0
    %2004 = vmatpush1.msra.mxu0 1.0
    %2005 = vmatprep.subr.mxu0 0.0
    %2006 = vmatpush1.msra.mxu0 1.0
    %2007 = vmatprep.subr.mxu0 0.0
    %2008 = vmatpush1.msra.mxu0 1.0
    %2009 = vmatprep.subr.mxu0 0.0
    %2010 = vmatpush1.msra.mxu0 1.0
    %2011 = vmatprep.subr.mxu0 0.0
    %2012 = vmatpush1.msra.mxu0 1.0
    %2013 = vmatprep.subr.mxu0 0.0
    %2014 = vmatpush1.msra.mxu0 1.0
    %2015 = vmatprep.subr.mxu0 0.0
    %2016 = vmatpush2.msra.mxu0 1.0
    %2017 = vmatprep.subr.mxu0 0.0
    %2018 = vmatpush2.msra.mxu0 1.0
    %2019 = vmatprep.subr.mxu0 0.0
    %2020 = vmatpush2.msra.mxu0 1.0
    %2021 = vmatprep.subr.mxu0 0.0
    %2022 = vmatpush2.msra.mxu0 1.0
    %2023 = vmatprep.subr.mxu0 0.0
    %2024 = vmatpush2.msra.mxu0 1.0
    %2025 = vmatprep.subr.mxu0 0.0
    %2026 = vmatpush2.msra.mxu0 1.0
    %2027 = vmatprep.subr.mxu0 0.0
    %2028 = vmatpush2.msra.mxu0 1.0
    %2029 = vmatprep.subr.mxu0 0.0
    %2030 = vmatpush2.msra.mxu0 1.0
    %2031 = vmatprep.subr.mxu0 0.0
    %2032 = vmatpush2.msra.mxu0 1.0
    %2033 = vmatprep.subr.mxu0 0.0
    %2034 = vmatpush2.msra.mxu0 1.0
    %2035 = vmatprep.subr.mxu0 0.0
    %2036 = vmatpush2.msra.mxu0 1.0
    %2037 = vmatprep.subr.mxu0 0.0
    %2038 = vmatpush2.msra.mxu0 1.0
    %2039 = vmatprep.subr.mxu0 0.0
    %2040 = vmatpush2.msra.mxu0 1.0
    %2041 = vmatprep.subr.mxu0 0.0
    %2042 = vmatpush2.msra.mxu0 1.0
    %2043 = vmatprep.subr.mxu0 0.0
    %2044 = vmatpush2.msra.mxu0 1.0
    %2045 = vmatprep.subr.mxu0 0.0
    %2046 = vmatpush2.msra.mxu0 1.0
    %2047 = vmatprep.mubr.f32.mxu0 %v1903
    %2048 = vmatmul.mubr.f32.gmra.mxu0 %v1902
    %v2049 = vpop.f32.mrf.mxu0
    %v2050 = vadd.f32 %v1975, %v2049
    %v2051 = vpop.f32.mrf.mxu0
    %2052 = vmatprep.mubr.f32.mxu0 %v1907
    %2053 = vmatmul.mubr.f32.gmra.mxu0 %v1906
    %v2054 = vpop.f32.mrf.mxu0
    %v2055 = vadd.f32 %v1980, %v2054
    %v2056 = vpop.f32.mrf.mxu0
    %2057 = vdwg.mxu0
    %v2058 = vmul.f32 %v1892, 0.001953125
    %v2059 = vmul.f32 %v1897, 0.001953125
    %v2060 = vmul.f32 %v2050, 0.001953125
    %v2061 = vmul.f32 %v2055, 0.001953125
    %v2062 = vmul.f32 %v2058, %v2058
    %v2063 = vmul.f32 %v2059, %v2059
    %v2064 = vsub.f32 %v2060, %v2062
    %v2065 = vsub.f32 %v2061, %v2063
    %v2066 = vadd.f32 %v2064, 1e-05
    %v2067 = vadd.f32 %v2065, 1e-05
    %v2068 = vrsqrt.pop %v2066
    %v2069 = vrsqrt.pop %v2067
    %v2070 = vmul.f32 %v1746, %v2068
    %v2071 = vmul.f32 %v1747, %v2069
    %2073 = vset.pattern.permute.xlu0 0
    %2074 = vperm.xlu0 %2073, %v2070
    %v2075 = vpop.permute.xlu0 %2074
    %2078 = vset.pattern.permute.xlu0 0
    %2079 = vperm.xlu0 %2078, %v2071
    %v2080 = vpop.permute.xlu0 %2079
    %v2082 = vmul.f32 %v1659, %v2075
    %v2083 = vmul.f32 %v1661, %v2075
    %v2084 = vmul.f32 %v1736, %v2075
    %v2085 = vmul.f32 %v1738, %v2075
    %v2086 = vmul.f32 %v1665, %v2080
    %v2087 = vmul.f32 %v1667, %v2080
    %v2088 = vmul.f32 %v1742, %v2080
    %v2089 = vmul.f32 %v1744, %v2080
    %v2090 = vmul.f32 %v2058, %v2070
    %v2091 = vmul.f32 %v2059, %v2071
    %v2092 = vsub.f32 %v1748, %v2090
    %v2093 = vsub.f32 %v1749, %v2091
    %2095 = vset.pattern.permute.xlu0 0
    %2096 = vperm.xlu0 %2095, %v2092
    %v2097 = vpop.permute.xlu0 %2096
    %2100 = vset.pattern.permute.xlu0 0
    %2101 = vperm.xlu0 %2100, %v2093
    %v2102 = vpop.permute.xlu0 %2101
    %v2104 = vadd.f32 %v2082, %v2097
    %v2105 = vadd.f32 %v2083, %v2097
    %v2106 = vadd.f32 %v2084, %v2097
    %v2107 = vadd.f32 %v2085, %v2097
    %v2108 = vadd.f32 %v2086, %v2102
    %v2109 = vadd.f32 %v2087, %v2102
    %v2110 = vadd.f32 %v2088, %v2102
    %v2111 = vadd.f32 %v2089, %v2102
    %v2112 = vadd.f32 %v2104, %v51
    %v2113 = vadd.f32 %v2105, %v52
    %v2114 = vadd.f32 %v2106, %v53
    %v2115 = vadd.f32 %v2107, %v54
    %v2116 = vadd.f32 %v2108, %v55
    %v2117 = vadd.f32 %v2109, %v56
    %v2118 = vadd.f32 %v2110, %v57
    %v2119 = vadd.f32 %v2111, %v58
    %v2120 = vmax.f32 %v2112, 0.0
    %v2121 = vmax.f32 %v2113, 0.0
    %v2122 = vmax.f32 %v2114, 0.0
    %v2123 = vmax.f32 %v2115, 0.0
    %v2124 = vmax.f32 %v2116, 0.0
    %v2125 = vmax.f32 %v2117, 0.0
    %v2126 = vmax.f32 %v2118, 0.0
    %v2127 = vmax.f32 %v2119, 0.0
    %2128 = vst [vmem:[#allocation5] sm:$0xff] %v2120
    %2129 = vst [vmem:[#allocation5 + $0x8] sm:$0xff] %v2121
    %2130 = vst [vmem:[#allocation5 + $0x10] sm:$0xff] %v2122
    %2131 = vst [vmem:[#allocation5 + $0x18] sm:$0xff] %v2123
    %2132 = vst [vmem:[#allocation5 + $0x20] sm:$0xff] %v2124
    %2133 = vst [vmem:[#allocation5 + $0x28] sm:$0xff] %v2125
    %2134 = vst [vmem:[#allocation5 + $0x30] sm:$0xff] %v2126
    %2135 = vst [vmem:[#allocation5 + $0x38] sm:$0xff] %v2127
    // Predicated region
    $region50: #{tpu_custom_call.1} parent=1 // pred_check
      _
    $region51: #{tpu_custom_call.1} parent=1 // pred_check_branch
      %2137 = sbr.rel (0) target = $region53
    $region52: #{tpu_custom_call.1} parent=1 // pred_region
      %s2139 = ssub.s32 1024, 1024
      %2140 = vsyncadd [#allocation4], %s2139
      %s2141 = sshll.u32 [#allocation5], 4
      %s2142 = int_to_ptr.vmem [resolvable:$true] %s2141
      %2147 = dma.vmem_to_hbm [thread:$0]  %s2142, 1024, %s11, [#allocation4], 512, 512, 32
    $region53: #{tpu_custom_call.1} parent=1 // pred_fallthru
      _
    // Predicated region
    $region54: #{tpu_custom_call.1} parent=1 // pred_check
      _
    $region55: #{tpu_custom_call.1} parent=1 // pred_check_branch
      %2149 = sbr.rel (0) target = $region57
    $region56: #{tpu_custom_call.1} parent=1 // pred_region
      %2150 = dma.done [#allocation4], 1024
    $region57: #{tpu_custom_call.1} parent=1 // pred_fallthru
      _
    %2151 = vsyncpa [#allocation3], 1
    %2152 = vsyncpa [#allocation4], 1

</llo_original>
